<compile_context>
chip_gen: v7x
topology: tpu7x:2x2x1
jax: 0.10.0
libtpu: 0.0.40
codegen_flags: <defaults>
</compile_context>

<pallas_src>
import functools

import numpy as np

import jax
import jax.numpy as jnp
from jax import lax
from jax.experimental import pallas as pl
from jax.experimental.pallas import tpu as pltpu

# ----------------------------- config (toy, lane-dense) ----------------------
VOCAB = 256                      # multiple of 128 -> lane-dense logits stores
HIDDEN = 128                     # multiple of 128 -> lane-dense activations
N_HEADS = 4
HEAD_DIM = HIDDEN // N_HEADS     # 32
ROTARY_DIM = 16                  # even, <= HEAD_DIM (GPT-J partial rotary)
N_LAYERS = 2
INNER = 4 * HIDDEN               # 512 (n_inner is None -> 4*n_embd)
SEQ = 8
LN_EPS = 1e-5
ROPE_THETA = 10000.0
DTYPE = jnp.float32              # activations / LN / softmax / residual math
WDTYPE = jnp.bfloat16            # streamed weights (MXU bf16 inputs)
W1_COLS = INNER + 3 * HIDDEN     # [fc_in | Wq*scale | Wk | Wv]  (no swap cols)
NEG_INF = -1e30                  # finite mask value (diagonal always unmasked)


# ------------------------------ Pallas kernels -------------------------------
def _gelu_new(y):
    # HF "gelu_new" (tanh approximation), GPT-J activation_function
    return 0.5 * y * (1.0 + jnp.tanh(0.7978845608028654 *
                                     (y + 0.044715 * y * y * y)))


def _stacked_layers_kernel(h_ref, cos_ref, sin_ref, g_ref, b_ref, w1_ref,
                           fc_in_b_ref, out_w_ref, fc_out_w_ref, fc_out_b_ref,
                           o_ref, *, eps):
    """All GPT-J blocks: grid axis = layer, hidden state resident in o_ref."""
    layer = pl.program_id(0)
    S, H = o_ref.shape

    # Layer 0: seed the resident hidden-state block with the embeddings.
    @pl.when(layer == 0)
    def _():
        o_ref[...] = h_ref[...]

    x = o_ref[...].astype(jnp.float32)                       # (S, H) residual

    # ---- fused LayerNorm (ln_1), f32 math ----
    mean = jnp.mean(x, axis=-1, keepdims=True)
    var = jnp.mean((x - mean) * (x - mean), axis=-1, keepdims=True)
    ln = (x - mean) * lax.rsqrt(var + eps) * g_ref[0] + b_ref[0]

    # ---- single fused projection on the MXU (bf16 in, f32 acc) ----
    # columns: [fc_in (INNER) | Wq*scale | Wk | Wv]
    z = jnp.dot(ln.astype(WDTYPE), w1_ref[0],
                preferred_element_type=jnp.float32)           # (S, W1_COLS)

    mlp = _gelu_new(z[:, 0:INNER] + fc_in_b_ref[0])           # (S, INNER)
    q = z[:, INNER + 0 * H:INNER + 1 * H]                     # head_dim^-0.5 folded
    k = z[:, INNER + 1 * H:INNER + 2 * H]
    v = z[:, INNER + 2 * H:INNER + 3 * H]

    # ---- GPT-J interleaved RoPE ----
    # Even/odd pair swap via pltpu.roll (XLU slot); signed sin table encodes
    # the -sin on even lanes / +sin on odd lanes and zero beyond rotary_dim.
    cos = jnp.concatenate([cos_ref[...]] * N_HEADS, axis=1)   # (S, H)
    sin = jnp.concatenate([sin_ref[...]] * N_HEADS, axis=1)
    even = (lax.broadcasted_iota(jnp.int32, (S, H), 1) % 2) == 0

    def _pair_swap(t):
        return jnp.where(even,
                         pltpu.roll(t, H - 1, axis=1),        # lane j <- j+1
                         pltpu.roll(t, 1, axis=1))            # lane j <- j-1

    q = q * cos + _pair_swap(q) * sin
    k = k * cos + _pair_swap(k) * sin

    # ---- causal self-attention, all heads inside one kernel body ----
    row = lax.broadcasted_iota(jnp.int32, (S, S), 0)
    col = lax.broadcasted_iota(jnp.int32, (S, S), 1)
    causal = col <= row
    out_w = out_w_ref[0]                                      # (H, H) bf16

    attn_out = jnp.zeros((S, H), jnp.float32)
    # TODO(synk): at real GPT-J sizes (16 heads, S>=2048) replace with
    # lax.fori_loop(..., unroll=True) over heads + flash-style online softmax
    # over a KV grid axis ('arbitrary') to bound vregs / VMEM.
    for hh in range(N_HEADS):                                 # static unroll (4)
        lo = hh * HEAD_DIM
        hi = lo + HEAD_DIM
        qh = q[:, lo:hi].astype(WDTYPE)
        kh = k[:, lo:hi].astype(WDTYPE)
        vh = v[:, lo:hi].astype(WDTYPE)
        s = lax.dot_general(qh, kh, (((1,), (1,)), ((), ())),
                            preferred_element_type=jnp.float32)   # (S, S)
        s = jnp.where(causal, s, NEG_INF)
        m = jnp.max(s, axis=-1, keepdims=True)
        p = jnp.exp(s - m)
        denom = jnp.sum(p, axis=-1, keepdims=True)
        oh = jnp.dot(p.astype(WDTYPE), vh, preferred_element_type=jnp.float32)
        oh = oh * pl.reciprocal(denom, approx=True)
        # out_proj folded per head -> avoids a lane-concat of head outputs
        attn_out = attn_out + jnp.dot(oh.astype(WDTYPE), out_w[lo:hi, :],
                                      preferred_element_type=jnp.float32)

    # ---- MLP output projection + bias + residual, fused epilogue ----
    mlp_out = jnp.dot(mlp.astype(WDTYPE), fc_out_w_ref[0],
                      preferred_element_type=jnp.float32) + fc_out_b_ref[0]
    o_ref[...] = (attn_out + mlp_out + x).astype(o_ref.dtype)


def _lnf_lmhead_kernel(h_ref, g_ref, b_ref, w_ref, wb_ref, o_ref, *, eps):
    """ln_f fused with the lm_head projection (lane-dense vocab, bf16 weight)."""
    x = h_ref[...].astype(jnp.float32)
    mean = jnp.mean(x, axis=-1, keepdims=True)
    var = jnp.mean((x - mean) * (x - mean), axis=-1, keepdims=True)
    ln = (x - mean) * lax.rsqrt(var + eps) * g_ref[...] + b_ref[...]
    logits = jnp.dot(ln.astype(WDTYPE), w_ref[...],
                     preferred_element_type=jnp.float32) + wb_ref[...]
    o_ref[...] = logits.astype(o_ref.dtype)


# ------------------------------ kernel wrappers -------------------------------
def gptj_layers(h, cos_t, sin_t, fp):
    """All transformer blocks in ONE pallas_call with grid=(N_LAYERS,)."""
    S, H = h.shape
    return pl.pallas_call(
        functools.partial(_stacked_layers_kernel, eps=LN_EPS),
        out_shape=jax.ShapeDtypeStruct((S, H), h.dtype),
        grid=(N_LAYERS,),
        in_specs=[
            pl.BlockSpec((S, H), lambda l: (0, 0)),            # embeddings (seed)
            pl.BlockSpec((S, HEAD_DIM), lambda l: (0, 0)),     # rope cos (S, hd)
            pl.BlockSpec((S, HEAD_DIM), lambda l: (0, 0)),     # rope sin (S, hd)
            pl.BlockSpec((1, 1, H), lambda l: (l, 0, 0)),      # ln1 gamma
            pl.BlockSpec((1, 1, H), lambda l: (l, 0, 0)),      # ln1 beta
            pl.BlockSpec((1, H, W1_COLS), lambda l: (l, 0, 0)),  # fused W1 (bf16)
            pl.BlockSpec((1, 1, INNER), lambda l: (l, 0, 0)),  # fc_in bias
            pl.BlockSpec((1, H, H), lambda l: (l, 0, 0)),      # out_proj W (bf16)
            pl.BlockSpec((1, INNER, H), lambda l: (l, 0, 0)),  # fc_out W (bf16)
            pl.BlockSpec((1, 1, H), lambda l: (l, 0, 0)),      # fc_out bias
        ],
        out_specs=pl.BlockSpec((S, H), lambda l: (0, 0)),      # resident h
        compiler_params=pltpu.CompilerParams(
            dimension_semantics=("arbitrary",)),               # carried state
    )(h, cos_t, sin_t, fp["ln1_g"], fp["ln1_b"], fp["w1"], fp["fc_in_b"],
      fp["out_w"], fp["fc_out_w"], fp["fc_out_b"])


def lnf_lm_head(h, g, b, w, wb):
    S, H = h.shape
    V = w.shape[1]
    # TODO(synk): at real vocab (50400) tile the vocab axis ('parallel') and
    # compute ln_f once into VMEM scratch under pl.when(vtile == 0).
    return pl.pallas_call(
        functools.partial(_lnf_lmhead_kernel, eps=LN_EPS),
        out_shape=jax.ShapeDtypeStruct((S, V), h.dtype),
        grid=(1,),
        in_specs=[
            pl.BlockSpec((S, H), lambda i: (0, 0)),
            pl.BlockSpec((1, H), lambda i: (0, 0)),
            pl.BlockSpec((1, H), lambda i: (0, 0)),
            pl.BlockSpec((H, V), lambda i: (0, 0)),
            pl.BlockSpec((1, V), lambda i: (0, 0)),
        ],
        out_specs=pl.BlockSpec((S, V), lambda i: (0, 0)),
        compiler_params=pltpu.CompilerParams(
            dimension_semantics=("arbitrary",)),
    )(h, g, b, w, wb)


# ------------------------------ plain-JAX glue --------------------------------
def rope_tables(positions):
    """Per-head-dim (S, HEAD_DIM) signed cos/sin tables for elementwise RoPE.

    For local index l within a head (pair i = l // 2):
      l <  ROTARY_DIM, l even: cos=cos_i, sin=-sin_i  (out = x*cos - partner*sin)
      l <  ROTARY_DIM, l odd : cos=cos_i, sin=+sin_i  (out = x*cos + partner*sin)
      l >= ROTARY_DIM        : cos=1,     sin=0       (pass-through)
    """
    pos = positions.astype(jnp.float32)
    half = ROTARY_DIM // 2
    inv_freq = 1.0 / (ROPE_THETA ** (
        jnp.arange(0, ROTARY_DIM, 2, dtype=jnp.float32) / ROTARY_DIM))  # (half,)
    ang = pos[:, None] * inv_freq[None, :]                              # (S, half)
    cos = jnp.cos(ang)
    sin = jnp.sin(ang)

    idx = np.arange(HEAD_DIM)
    freq_idx = np.minimum(idx // 2, half - 1)
    in_rot = jnp.asarray(idx < ROTARY_DIM)
    sign = jnp.asarray(np.where(idx % 2 == 0, -1.0, 1.0), np.float32)

    cos_hd = jnp.where(in_rot[None, :], cos[:, freq_idx], 1.0).astype(DTYPE)
    sin_hd = jnp.where(in_rot[None, :], sin[:, freq_idx] * sign[None, :],
                       0.0).astype(DTYPE)
    return cos_hd, sin_hd                                               # (S, hd)


def fuse_params(params):
    """Fuse + stack per-layer weights for the single layer-grid kernel."""
    scale = float(HEAD_DIM) ** -0.5
    layers = params["layers"]

    def stack(fn):
        return jnp.stack([fn(lp) for lp in layers], axis=0)

    w1 = stack(lambda lp: jnp.concatenate(
        [lp["fc_in_w"],
         lp["qkv_w"][:, 0:HIDDEN] * scale,        # fold 1/sqrt(head_dim) into Wq
         lp["qkv_w"][:, HIDDEN:2 * HIDDEN],
         lp["qkv_w"][:, 2 * HIDDEN:3 * HIDDEN]], axis=1)).astype(WDTYPE)
    assert w1.shape == (N_LAYERS, HIDDEN, W1_COLS)

    return {
        "wte": params["wte"],
        "lnf_g": params["lnf_g"].reshape(1, HIDDEN),
        "lnf_b": params["lnf_b"].reshape(1, HIDDEN),
        "lm_head_w": params["lm_head_w"].astype(WDTYPE),      # (H, V) bf16
        "lm_head_b": params["lm_head_b"].reshape(1, VOCAB),
        "w1": w1,                                             # (L, H, W1_COLS)
        "ln1_g": stack(lambda lp: lp["ln1_g"].reshape(1, HIDDEN)),
        "ln1_b": stack(lambda lp: lp["ln1_b"].reshape(1, HIDDEN)),
        "fc_in_b": stack(lambda lp: lp["fc_in_b"].reshape(1, INNER)),
        "out_w": stack(lambda lp: lp["out_w"]).astype(WDTYPE),
        "fc_out_w": stack(lambda lp: lp["fc_out_w"]).astype(WDTYPE),
        "fc_out_b": stack(lambda lp: lp["fc_out_b"].reshape(1, HIDDEN)),
    }


def gptj_forward(fparams, input_ids, positions):
    cos_t, sin_t = rope_tables(positions)                     # (S, HEAD_DIM)
    h = jnp.take(fparams["wte"], input_ids, axis=0)           # (S, H)
    h = gptj_layers(h, cos_t, sin_t, fparams)                 # one kernel, all layers
    logits = lnf_lm_head(h, fparams["lnf_g"], fparams["lnf_b"],
                         fparams["lm_head_w"], fparams["lm_head_b"])
    next_token = jnp.argmax(logits[-1], axis=-1)              # greedy "sampler"
    return next_token, logits


# ------------------------------ parameter init --------------------------------
def init_params(key):
    def dense(k, shape, scale=0.02):
        return (scale * jax.random.normal(k, shape, dtype=jnp.float32)
                ).astype(DTYPE)

    keys = jax.random.split(key, 4 + N_LAYERS)
    params = {
        "wte": dense(keys[0], (VOCAB, HIDDEN)),
        "lnf_g": jnp.ones((HIDDEN,), DTYPE),
        "lnf_b": jnp.zeros((HIDDEN,), DTYPE),
        "lm_head_w": dense(keys[1], (HIDDEN, VOCAB)),
        "lm_head_b": dense(keys[2], (VOCAB,)),
        "layers": [],
    }
    for li in range(N_LAYERS):
        lk = jax.random.split(keys[4 + li], 6)
        params["layers"].append({
            "ln1_g": jnp.ones((HIDDEN,), DTYPE),
            "ln1_b": jnp.zeros((HIDDEN,), DTYPE),
            "qkv_w": dense(lk[0], (HIDDEN, 3 * HIDDEN)),   # no bias
            "out_w": dense(lk[1], (HIDDEN, HIDDEN)),       # no bias
            "fc_in_w": dense(lk[2], (HIDDEN, INNER)),
            "fc_in_b": dense(lk[3], (INNER,)),
            "fc_out_w": dense(lk[4], (INNER, HIDDEN)),
            "fc_out_b": dense(lk[5], (HIDDEN,)),
        })
    return params


# ----------------------------------- main --------------------------------------
if __name__ == "__main__":
    key = jax.random.PRNGKey(0)
    pkey, ikey = jax.random.split(key)
    params = init_params(pkey)
    fparams = fuse_params(params)

    input_ids = jax.random.randint(ikey, (SEQ,), 0, VOCAB, dtype=jnp.int32)
    positions = jnp.arange(SEQ, dtype=jnp.int32)

    fwd = jax.jit(lambda ids, pos: gptj_forward(fparams, ids, pos))
    next_token, logits = fwd(input_ids, positions)
    jax.block_until_ready((next_token, logits))

    assert logits.shape == (SEQ, VOCAB)
    assert next_token.shape == ()
    assert bool(jnp.isfinite(logits).all())
    print("KERNEL_OK")
</pallas_src>

<mosaic_0001>
module attributes {stable_mosaic.version = 11 : i64} {
  func.func @_lnf_lmhead_kernel(%arg0: i32, %arg1: memref<8x128xf32, #tpu.memory_space<vmem>>, %arg2: memref<1x128xf32, #tpu.memory_space<vmem>>, %arg3: memref<1x128xf32, #tpu.memory_space<vmem>>, %arg4: memref<128x256xbf16, #tpu.memory_space<vmem>>, %arg5: memref<1x256xf32, #tpu.memory_space<vmem>>, %arg6: memref<8x256xf32, #tpu.memory_space<vmem>>) attributes {dimension_semantics = [#tpu.dimension_semantics<arbitrary>], iteration_bounds = array<i64: 1>, scalar_prefetch = 0 : i64, scratch_operands = 0 : i64, tpu.core_type = #tpu.core_type<tc>, window_params = [{pipeline_mode = #tpu.pipeline_mode<synchronous>, transform_indices = @transform_0, window_bounds = array<i64: 8, 128>}, {pipeline_mode = #tpu.pipeline_mode<synchronous>, transform_indices = @transform_1, window_bounds = array<i64: 1, 128>}, {pipeline_mode = #tpu.pipeline_mode<synchronous>, transform_indices = @transform_2, window_bounds = array<i64: 1, 128>}, {pipeline_mode = #tpu.pipeline_mode<synchronous>, transform_indices = @transform_3, window_bounds = array<i64: 128, 256>}, {pipeline_mode = #tpu.pipeline_mode<synchronous>, transform_indices = @transform_4, window_bounds = array<i64: 1, 256>}, {pipeline_mode = #tpu.pipeline_mode<synchronous>, transform_indices = @transform_5, window_bounds = array<i64: 8, 256>}]} {
    %c0 = arith.constant 0 : index
    %c0_0 = arith.constant 0 : index
    %0 = vector.load %arg1[%c0, %c0_0] : memref<8x128xf32, #tpu.memory_space<vmem>>, vector<8x128xf32>
    %cst = arith.constant dense<0.000000e+00> : vector<8xf32>
    %1 = vector.multi_reduction <add>, %0, %cst [1] : vector<8x128xf32> to vector<8xf32>
    %2 = vector.shape_cast %1 : vector<8xf32> to vector<8x1xf32>
    %cst_1 = arith.constant 1.280000e+02 : f32
    %3 = vector.broadcast %cst_1 : f32 to vector<8x1xf32>
    %4 = arith.divf %2, %3 : vector<8x1xf32>
    %5 = vector.broadcast %4 : vector<8x1xf32> to vector<8x128xf32>
    %6 = arith.subf %0, %5 : vector<8x128xf32>
    %7 = vector.broadcast %4 : vector<8x1xf32> to vector<8x128xf32>
    %8 = arith.subf %0, %7 : vector<8x128xf32>
    %9 = arith.mulf %6, %8 : vector<8x128xf32>
    %cst_2 = arith.constant dense<0.000000e+00> : vector<8xf32>
    %10 = vector.multi_reduction <add>, %9, %cst_2 [1] : vector<8x128xf32> to vector<8xf32>
    %11 = vector.shape_cast %10 : vector<8xf32> to vector<8x1xf32>
    %cst_3 = arith.constant 1.280000e+02 : f32
    %12 = vector.broadcast %cst_3 : f32 to vector<8x1xf32>
    %13 = arith.divf %11, %12 : vector<8x1xf32>
    %14 = vector.broadcast %4 : vector<8x1xf32> to vector<8x128xf32>
    %15 = arith.subf %0, %14 : vector<8x128xf32>
    %cst_4 = arith.constant 9.99999974E-6 : f32
    %16 = vector.broadcast %cst_4 : f32 to vector<8x1xf32>
    %17 = arith.addf %13, %16 : vector<8x1xf32>
    %18 = math.rsqrt %17 : vector<8x1xf32>
    %19 = vector.broadcast %18 : vector<8x1xf32> to vector<8x128xf32>
    %20 = arith.mulf %15, %19 : vector<8x128xf32>
    %c0_5 = arith.constant 0 : index
    %c0_6 = arith.constant 0 : index
    %21 = vector.load %arg2[%c0_5, %c0_6] : memref<1x128xf32, #tpu.memory_space<vmem>>, vector<1x128xf32>
    %22 = vector.broadcast %21 : vector<1x128xf32> to vector<8x128xf32>
    %23 = arith.mulf %20, %22 : vector<8x128xf32>
    %c0_7 = arith.constant 0 : index
    %c0_8 = arith.constant 0 : index
    %24 = vector.load %arg3[%c0_7, %c0_8] : memref<1x128xf32, #tpu.memory_space<vmem>>, vector<1x128xf32>
    %25 = vector.broadcast %24 : vector<1x128xf32> to vector<8x128xf32>
    %26 = arith.addf %23, %25 : vector<8x128xf32>
    %27 = arith.truncf %26 : vector<8x128xf32> to vector<8x128xbf16>
    %c0_9 = arith.constant 0 : index
    %c0_10 = arith.constant 0 : index
    %28 = vector.load %arg4[%c0_9, %c0_10] : memref<128x256xbf16, #tpu.memory_space<vmem>>, vector<128x256xbf16>
    %cst_11 = arith.constant dense<0.000000e+00> : vector<8x256xf32>
    %29 = tpu.matmul %27, %28, %cst_11 {dimension_numbers = #tpu.dot_dimension_numbers<[1], [0], [0], [1], [0, 0, 1, 1], [], []>} : vector<8x128xbf16>, vector<128x256xbf16>, vector<8x256xf32> -> vector<8x256xf32>
    %c0_12 = arith.constant 0 : index
    %c0_13 = arith.constant 0 : index
    %30 = vector.load %arg5[%c0_12, %c0_13] : memref<1x256xf32, #tpu.memory_space<vmem>>, vector<1x256xf32>
    %31 = vector.broadcast %30 : vector<1x256xf32> to vector<8x256xf32>
    %32 = arith.addf %29, %31 : vector<8x256xf32>
    %c0_14 = arith.constant 0 : index
    %c0_15 = arith.constant 0 : index
    %33 = vector.load %arg6[%c0_14, %c0_15] : memref<8x256xf32, #tpu.memory_space<vmem>>, vector<8x256xf32>
    tpu.vector_store %arg6[%c0_14, %c0_15], %32 {strides = array<i32>} : memref<8x256xf32, #tpu.memory_space<vmem>>, vector<8x256xf32>,
    return
  }
  func.func @transform_0(%arg0: i32) -> (i32, i32) {
    %c0_i32 = arith.constant 0 : i32
    %c0_i32_0 = arith.constant 0 : i32
    %c0_i32_1 = arith.constant 0 : i32
    return %c0_i32, %c0_i32_0 : i32, i32
  }
  func.func @transform_1(%arg0: i32) -> (i32, i32) {
    %c0_i32 = arith.constant 0 : i32
    %c0_i32_0 = arith.constant 0 : i32
    %c0_i32_1 = arith.constant 0 : i32
    return %c0_i32, %c0_i32_0 : i32, i32
  }
  func.func @transform_2(%arg0: i32) -> (i32, i32) {
    %c0_i32 = arith.constant 0 : i32
    %c0_i32_0 = arith.constant 0 : i32
    %c0_i32_1 = arith.constant 0 : i32
    return %c0_i32, %c0_i32_0 : i32, i32
  }
  func.func @transform_3(%arg0: i32) -> (i32, i32) {
    %c0_i32 = arith.constant 0 : i32
    %c0_i32_0 = arith.constant 0 : i32
    %c0_i32_1 = arith.constant 0 : i32
    return %c0_i32, %c0_i32_0 : i32, i32
  }
  func.func @transform_4(%arg0: i32) -> (i32, i32) {
    %c0_i32 = arith.constant 0 : i32
    %c0_i32_0 = arith.constant 0 : i32
    %c0_i32_1 = arith.constant 0 : i32
    return %c0_i32, %c0_i32_0 : i32, i32
  }
  func.func @transform_5(%arg0: i32) -> (i32, i32) {
    %c0_i32 = arith.constant 0 : i32
    %c0_i32_0 = arith.constant 0 : i32
    %c0_i32_1 = arith.constant 0 : i32
    return %c0_i32, %c0_i32_0 : i32, i32
  }
}

module attributes {stable_mosaic.version = 11 : i64} {
  func.func @_stacked_layers_kernel(%arg0: i32, %arg1: memref<8x128xf32, #tpu.memory_space<vmem>>, %arg2: memref<8x32xf32, #tpu.memory_space<vmem>>, %arg3: memref<8x32xf32, #tpu.memory_space<vmem>>, %arg4: memref<1x1x128xf32, #tpu.memory_space<vmem>>, %arg5: memref<1x1x128xf32, #tpu.memory_space<vmem>>, %arg6: memref<1x128x896xbf16, #tpu.memory_space<vmem>>, %arg7: memref<1x1x512xf32, #tpu.memory_space<vmem>>, %arg8: memref<1x128x128xbf16, #tpu.memory_space<vmem>>, %arg9: memref<1x512x128xbf16, #tpu.memory_space<vmem>>, %arg10: memref<1x1x128xf32, #tpu.memory_space<vmem>>, %arg11: memref<8x128xf32, #tpu.memory_space<vmem>>) attributes {dimension_semantics = [#tpu.dimension_semantics<arbitrary>], iteration_bounds = array<i64: 2>, scalar_prefetch = 0 : i64, scratch_operands = 0 : i64, tpu.core_type = #tpu.core_type<tc>, window_params = [{pipeline_mode = #tpu.pipeline_mode<synchronous>, transform_indices = @transform_0, window_bounds = array<i64: 8, 128>}, {pipeline_mode = #tpu.pipeline_mode<synchronous>, transform_indices = @transform_1, window_bounds = array<i64: 8, 32>}, {pipeline_mode = #tpu.pipeline_mode<synchronous>, transform_indices = @transform_2, window_bounds = array<i64: 8, 32>}, {transform_indices = @transform_3, window_bounds = array<i64: 1, 1, 128>}, {transform_indices = @transform_4, window_bounds = array<i64: 1, 1, 128>}, {transform_indices = @transform_5, window_bounds = array<i64: 1, 128, 896>}, {transform_indices = @transform_6, window_bounds = array<i64: 1, 1, 512>}, {transform_indices = @transform_7, window_bounds = array<i64: 1, 128, 128>}, {transform_indices = @transform_8, window_bounds = array<i64: 1, 512, 128>}, {transform_indices = @transform_9, window_bounds = array<i64: 1, 1, 128>}, {pipeline_mode = #tpu.pipeline_mode<synchronous>, transform_indices = @transform_10, window_bounds = array<i64: 8, 128>}]} {
    %c0_i32 = arith.constant 0 : i32
    %0 = arith.cmpi eq, %arg0, %c0_i32 : i32
    %1 = arith.extui %0 : i1 to i32
    %c0_i32_0 = arith.constant 0 : i32
    %2 = arith.cmpi ne, %1, %c0_i32_0 : i32
    scf.if %2 {
      %c0_72 = arith.constant 0 : index
      %c0_73 = arith.constant 0 : index
      %209 = vector.load %arg1[%c0_72, %c0_73] : memref<8x128xf32, #tpu.memory_space<vmem>>, vector<8x128xf32>
      %c0_74 = arith.constant 0 : index
      %c0_75 = arith.constant 0 : index
      %210 = vector.load %arg11[%c0_74, %c0_75] : memref<8x128xf32, #tpu.memory_space<vmem>>, vector<8x128xf32>
      tpu.vector_store %arg11[%c0_74, %c0_75], %209 {strides = array<i32>} : memref<8x128xf32, #tpu.memory_space<vmem>>, vector<8x128xf32>,
    } else {
    }
    %c0 = arith.constant 0 : index
    %c0_1 = arith.constant 0 : index
    %3 = vector.load %arg11[%c0, %c0_1] : memref<8x128xf32, #tpu.memory_space<vmem>>, vector<8x128xf32>
    %cst = arith.constant dense<0.000000e+00> : vector<8xf32>
    %4 = vector.multi_reduction <add>, %3, %cst [1] : vector<8x128xf32> to vector<8xf32>
    %5 = vector.shape_cast %4 : vector<8xf32> to vector<8x1xf32>
    %cst_2 = arith.constant 1.280000e+02 : f32
    %6 = vector.broadcast %cst_2 : f32 to vector<8x1xf32>
    %7 = arith.divf %5, %6 : vector<8x1xf32>
    %8 = vector.broadcast %7 : vector<8x1xf32> to vector<8x128xf32>
    %9 = arith.subf %3, %8 : vector<8x128xf32>
    %10 = vector.broadcast %7 : vector<8x1xf32> to vector<8x128xf32>
    %11 = arith.subf %3, %10 : vector<8x128xf32>
    %12 = arith.mulf %9, %11 : vector<8x128xf32>
    %cst_3 = arith.constant dense<0.000000e+00> : vector<8xf32>
    %13 = vector.multi_reduction <add>, %12, %cst_3 [1] : vector<8x128xf32> to vector<8xf32>
    %14 = vector.shape_cast %13 : vector<8xf32> to vector<8x1xf32>
    %cst_4 = arith.constant 1.280000e+02 : f32
    %15 = vector.broadcast %cst_4 : f32 to vector<8x1xf32>
    %16 = arith.divf %14, %15 : vector<8x1xf32>
    %17 = vector.broadcast %7 : vector<8x1xf32> to vector<8x128xf32>
    %18 = arith.subf %3, %17 : vector<8x128xf32>
    %cst_5 = arith.constant 9.99999974E-6 : f32
    %19 = vector.broadcast %cst_5 : f32 to vector<8x1xf32>
    %20 = arith.addf %16, %19 : vector<8x1xf32>
    %21 = math.rsqrt %20 : vector<8x1xf32>
    %22 = vector.broadcast %21 : vector<8x1xf32> to vector<8x128xf32>
    %23 = arith.mulf %18, %22 : vector<8x128xf32>
    %c0_6 = arith.constant 0 : index
    %c0_7 = arith.constant 0 : index
    %c0_8 = arith.constant 0 : index
    %24 = vector.load %arg4[%c0_6, %c0_7, %c0_8] : memref<1x1x128xf32, #tpu.memory_space<vmem>>, vector<1x1x128xf32>
    %25 = vector.shape_cast %24 : vector<1x1x128xf32> to vector<1x128xf32>
    %26 = vector.broadcast %25 : vector<1x128xf32> to vector<8x128xf32>
    %27 = arith.mulf %23, %26 : vector<8x128xf32>
    %c0_9 = arith.constant 0 : index
    %c0_10 = arith.constant 0 : index
    %c0_11 = arith.constant 0 : index
    %28 = vector.load %arg5[%c0_9, %c0_10, %c0_11] : memref<1x1x128xf32, #tpu.memory_space<vmem>>, vector<1x1x128xf32>
    %29 = vector.shape_cast %28 : vector<1x1x128xf32> to vector<1x128xf32>
    %30 = vector.broadcast %29 : vector<1x128xf32> to vector<8x128xf32>
    %31 = arith.addf %27, %30 : vector<8x128xf32>
    %32 = arith.truncf %31 : vector<8x128xf32> to vector<8x128xbf16>
    %c0_12 = arith.constant 0 : index
    %c0_13 = arith.constant 0 : index
    %c0_14 = arith.constant 0 : index
    %33 = vector.load %arg6[%c0_12, %c0_13, %c0_14] : memref<1x128x896xbf16, #tpu.memory_space<vmem>>, vector<1x128x896xbf16>
    %34 = vector.shape_cast %33 : vector<1x128x896xbf16> to vector<128x896xbf16>
    %cst_15 = arith.constant dense<0.000000e+00> : vector<8x896xf32>
    %35 = tpu.matmul %32, %34, %cst_15 {dimension_numbers = #tpu.dot_dimension_numbers<[1], [0], [0], [1], [0, 0, 1, 1], [], []>} : vector<8x128xbf16>, vector<128x896xbf16>, vector<8x896xf32> -> vector<8x896xf32>
    %36 = vector.extract_strided_slice %35 {offsets = [0, 0], sizes = [8, 512], strides = [1, 1]} : vector<8x896xf32> to vector<8x512xf32>
    %c0_16 = arith.constant 0 : index
    %c0_17 = arith.constant 0 : index
    %c0_18 = arith.constant 0 : index
    %37 = vector.load %arg7[%c0_16, %c0_17, %c0_18] : memref<1x1x512xf32, #tpu.memory_space<vmem>>, vector<1x1x512xf32>
    %38 = vector.shape_cast %37 : vector<1x1x512xf32> to vector<1x512xf32>
    %39 = vector.broadcast %38 : vector<1x512xf32> to vector<8x512xf32>
    %40 = arith.addf %36, %39 : vector<8x512xf32>
    %cst_19 = arith.constant 5.000000e-01 : f32
    %41 = vector.broadcast %cst_19 : f32 to vector<8x512xf32>
    %42 = arith.mulf %41, %40 : vector<8x512xf32>
    %cst_20 = arith.constant 4.471500e-02 : f32
    %43 = vector.broadcast %cst_20 : f32 to vector<8x512xf32>
    %44 = arith.mulf %43, %40 : vector<8x512xf32>
    %45 = arith.mulf %44, %40 : vector<8x512xf32>
    %46 = arith.mulf %45, %40 : vector<8x512xf32>
    %47 = arith.addf %40, %46 : vector<8x512xf32>
    %cst_21 = arith.constant 0.797884583 : f32
    %48 = vector.broadcast %cst_21 : f32 to vector<8x512xf32>
    %49 = arith.mulf %48, %47 : vector<8x512xf32>
    %50 = math.tanh %49 : vector<8x512xf32>
    %cst_22 = arith.constant 1.000000e+00 : f32
    %51 = vector.broadcast %cst_22 : f32 to vector<8x512xf32>
    %52 = arith.addf %51, %50 : vector<8x512xf32>
    %53 = arith.mulf %42, %52 : vector<8x512xf32>
    %54 = vector.extract_strided_slice %35 {offsets = [0, 512], sizes = [8, 128], strides = [1, 1]} : vector<8x896xf32> to vector<8x128xf32>
    %55 = vector.extract_strided_slice %35 {offsets = [0, 640], sizes = [8, 128], strides = [1, 1]} : vector<8x896xf32> to vector<8x128xf32>
    %56 = vector.extract_strided_slice %35 {offsets = [0, 768], sizes = [8, 128], strides = [1, 1]} : vector<8x896xf32> to vector<8x128xf32>
    %c0_23 = arith.constant 0 : index
    %c0_24 = arith.constant 0 : index
    %57 = vector.load %arg2[%c0_23, %c0_24] : memref<8x32xf32, #tpu.memory_space<vmem>>, vector<8x32xf32>
    %58 = tpu.concatenate %57, %57, %57, %57 in 1 : vector<8x32xf32>, vector<8x32xf32>, vector<8x32xf32>, vector<8x32xf32> -> vector<8x128xf32>
    %c0_25 = arith.constant 0 : index
    %c0_26 = arith.constant 0 : index
    %59 = vector.load %arg3[%c0_25, %c0_26] : memref<8x32xf32, #tpu.memory_space<vmem>>, vector<8x32xf32>
    %60 = tpu.concatenate %59, %59, %59, %59 in 1 : vector<8x32xf32>, vector<8x32xf32>, vector<8x32xf32>, vector<8x32xf32> -> vector<8x128xf32>
    %61 = tpu.iota {dimensions = array<i32: 1>} : vector<8x128xi32>
    %c2_i32 = arith.constant 2 : i32
    %c0_i32_27 = arith.constant 0 : i32
    %62 = arith.cmpi eq, %c2_i32, %c0_i32_27 : i32
    %c1_i32 = arith.constant 1 : i32
    %63 = arith.select %62, %c1_i32, %c2_i32 : i32
    %64 = vector.broadcast %63 : i32 to vector<8x128xi32>
    %65 = arith.remsi %61, %64 : vector<8x128xi32>
    %c0_i32_28 = arith.constant 0 : i32
    %66 = vector.broadcast %c0_i32_28 : i32 to vector<8x128xi32>
    %67 = arith.cmpi ne, %65, %66 : vector<8x128xi32>
    %c0_i32_29 = arith.constant 0 : i32
    %68 = vector.broadcast %c0_i32_29 : i32 to vector<8x128xi32>
    %69 = arith.cmpi slt, %65, %68 : vector<8x128xi32>
    %c0_i32_30 = arith.constant 0 : i32
    %70 = arith.cmpi slt, %63, %c0_i32_30 : i32
    %71 = vector.broadcast %70 : i1 to vector<8x128xi1>
    %72 = vector.broadcast %71 : vector<8x128xi1> to vector<8x128xi1>
    %73 = arith.xori %69, %72 : vector<8x128xi1>
    %74 = arith.andi %73, %67 : vector<8x128xi1>
    %75 = vector.broadcast %63 : i32 to vector<8x128xi32>
    %76 = arith.addi %65, %75 : vector<8x128xi32>
    %77 = arith.select %74, %76, %65 : vector<8x128xi1>, vector<8x128xi32>
    %c0_i32_31 = arith.constant 0 : i32
    %78 = vector.broadcast %c0_i32_31 : i32 to vector<8x128xi32>
    %79 = arith.cmpi eq, %77, %78 : vector<8x128xi32>
    %80 = arith.mulf %54, %58 : vector<8x128xf32>
    %c127_i32 = arith.constant 127 : i32
    %81 = tpu.dynamic_rotate %54 by %c127_i32 dim 1 : vector<8x128xf32>, i32 -> vector<8x128xf32>
    %c1_i32_32 = arith.constant 1 : i32
    %82 = tpu.dynamic_rotate %54 by %c1_i32_32 dim 1 : vector<8x128xf32>, i32 -> vector<8x128xf32>
    %83 = arith.select %79, %81, %82 : vector<8x128xi1>, vector<8x128xf32>
    %84 = arith.mulf %83, %60 : vector<8x128xf32>
    %85 = arith.addf %80, %84 : vector<8x128xf32>
    %86 = arith.mulf %55, %58 : vector<8x128xf32>
    %c127_i32_33 = arith.constant 127 : i32
    %87 = tpu.dynamic_rotate %55 by %c127_i32_33 dim 1 : vector<8x128xf32>, i32 -> vector<8x128xf32>
    %c1_i32_34 = arith.constant 1 : i32
    %88 = tpu.dynamic_rotate %55 by %c1_i32_34 dim 1 : vector<8x128xf32>, i32 -> vector<8x128xf32>
    %89 = arith.select %79, %87, %88 : vector<8x128xi1>, vector<8x128xf32>
    %90 = arith.mulf %89, %60 : vector<8x128xf32>
    %91 = arith.addf %86, %90 : vector<8x128xf32>
    %92 = tpu.iota {dimensions = array<i32: 0>} : vector<8x8xi32>
    %93 = tpu.iota {dimensions = array<i32: 1>} : vector<8x8xi32>
    %94 = arith.cmpi sle, %93, %92 : vector<8x8xi32>
    %c0_35 = arith.constant 0 : index
    %c0_36 = arith.constant 0 : index
    %c0_37 = arith.constant 0 : index
    %95 = vector.load %arg8[%c0_35, %c0_36, %c0_37] : memref<1x128x128xbf16, #tpu.memory_space<vmem>>, vector<1x128x128xbf16>
    %96 = vector.shape_cast %95 : vector<1x128x128xbf16> to vector<128x128xbf16>
    %cst_38 = arith.constant 0.000000e+00 : f32
    %97 = vector.broadcast %cst_38 : f32 to vector<8x128xf32>
    %98 = vector.extract_strided_slice %85 {offsets = [0, 0], sizes = [8, 32], strides = [1, 1]} : vector<8x128xf32> to vector<8x32xf32>
    %99 = arith.truncf %98 : vector<8x32xf32> to vector<8x32xbf16>
    %100 = vector.extract_strided_slice %91 {offsets = [0, 0], sizes = [8, 32], strides = [1, 1]} : vector<8x128xf32> to vector<8x32xf32>
    %101 = arith.truncf %100 : vector<8x32xf32> to vector<8x32xbf16>
    %102 = vector.extract_strided_slice %56 {offsets = [0, 0], sizes = [8, 32], strides = [1, 1]} : vector<8x128xf32> to vector<8x32xf32>
    %103 = arith.truncf %102 : vector<8x32xf32> to vector<8x32xbf16>
    %cst_39 = arith.constant dense<0.000000e+00> : vector<8x8xf32>
    %104 = tpu.matmul %99, %101, %cst_39 {dimension_numbers = #tpu.dot_dimension_numbers<[1], [1], [0], [0], [0, 0, 1, 0], [], []>} : vector<8x32xbf16>, vector<8x32xbf16>, vector<8x8xf32> -> vector<8x8xf32>
    %cst_40 = arith.constant -1.000000e+30 : f32
    %105 = vector.broadcast %cst_40 : f32 to vector<8x8xf32>
    %106 = arith.select %94, %104, %105 : vector<8x8xi1>, vector<8x8xf32>
    %cst_41 = arith.constant dense<0xFF800000> : vector<8xf32>
    %107 = vector.multi_reduction <maximumf>, %106, %cst_41 [1] : vector<8x8xf32> to vector<8xf32>
    %108 = vector.shape_cast %107 : vector<8xf32> to vector<8x1xf32>
    %109 = vector.broadcast %108 : vector<8x1xf32> to vector<8x8xf32>
    %110 = arith.subf %106, %109 : vector<8x8xf32>
    %111 = math.exp %110 : vector<8x8xf32>
    %cst_42 = arith.constant dense<0.000000e+00> : vector<8xf32>
    %112 = vector.multi_reduction <add>, %111, %cst_42 [1] : vector<8x8xf32> to vector<8xf32>
    %113 = vector.shape_cast %112 : vector<8xf32> to vector<8x1xf32>
    %114 = arith.truncf %111 : vector<8x8xf32> to vector<8x8xbf16>
    %cst_43 = arith.constant dense<0.000000e+00> : vector<8x32xf32>
    %115 = tpu.matmul %114, %103, %cst_43 {dimension_numbers = #tpu.dot_dimension_numbers<[1], [0], [0], [1], [0, 0, 1, 1], [], []>} : vector<8x8xbf16>, vector<8x32xbf16>, vector<8x32xf32> -> vector<8x32xf32>
    %116 = tpu.reciprocal %113 {approx = true} : vector<8x1xf32> -> vector<8x1xf32>
    %117 = vector.broadcast %116 : vector<8x1xf32> to vector<8x32xf32>
    %118 = arith.mulf %115, %117 : vector<8x32xf32>
    %119 = arith.truncf %118 : vector<8x32xf32> to vector<8x32xbf16>
    %120 = vector.extract_strided_slice %96 {offsets = [0, 0], sizes = [32, 128], strides = [1, 1]} : vector<128x128xbf16> to vector<32x128xbf16>
    %cst_44 = arith.constant dense<0.000000e+00> : vector<8x128xf32>
    %121 = tpu.matmul %119, %120, %cst_44 {dimension_numbers = #tpu.dot_dimension_numbers<[1], [0], [0], [1], [0, 0, 1, 1], [], []>} : vector<8x32xbf16>, vector<32x128xbf16>, vector<8x128xf32> -> vector<8x128xf32>
    %122 = arith.addf %97, %121 : vector<8x128xf32>
    %123 = vector.extract_strided_slice %85 {offsets = [0, 32], sizes = [8, 32], strides = [1, 1]} : vector<8x128xf32> to vector<8x32xf32>
    %124 = arith.truncf %123 : vector<8x32xf32> to vector<8x32xbf16>
    %125 = vector.extract_strided_slice %91 {offsets = [0, 32], sizes = [8, 32], strides = [1, 1]} : vector<8x128xf32> to vector<8x32xf32>
    %126 = arith.truncf %125 : vector<8x32xf32> to vector<8x32xbf16>
    %127 = vector.extract_strided_slice %56 {offsets = [0, 32], sizes = [8, 32], strides = [1, 1]} : vector<8x128xf32> to vector<8x32xf32>
    %128 = arith.truncf %127 : vector<8x32xf32> to vector<8x32xbf16>
    %cst_45 = arith.constant dense<0.000000e+00> : vector<8x8xf32>
    %129 = tpu.matmul %124, %126, %cst_45 {dimension_numbers = #tpu.dot_dimension_numbers<[1], [1], [0], [0], [0, 0, 1, 0], [], []>} : vector<8x32xbf16>, vector<8x32xbf16>, vector<8x8xf32> -> vector<8x8xf32>
    %cst_46 = arith.constant -1.000000e+30 : f32
    %130 = vector.broadcast %cst_46 : f32 to vector<8x8xf32>
    %131 = arith.select %94, %129, %130 : vector<8x8xi1>, vector<8x8xf32>
    %cst_47 = arith.constant dense<0xFF800000> : vector<8xf32>
    %132 = vector.multi_reduction <maximumf>, %131, %cst_47 [1] : vector<8x8xf32> to vector<8xf32>
    %133 = vector.shape_cast %132 : vector<8xf32> to vector<8x1xf32>
    %134 = vector.broadcast %133 : vector<8x1xf32> to vector<8x8xf32>
    %135 = arith.subf %131, %134 : vector<8x8xf32>
    %136 = math.exp %135 : vector<8x8xf32>
    %cst_48 = arith.constant dense<0.000000e+00> : vector<8xf32>
    %137 = vector.multi_reduction <add>, %136, %cst_48 [1] : vector<8x8xf32> to vector<8xf32>
    %138 = vector.shape_cast %137 : vector<8xf32> to vector<8x1xf32>
    %139 = arith.truncf %136 : vector<8x8xf32> to vector<8x8xbf16>
    %cst_49 = arith.constant dense<0.000000e+00> : vector<8x32xf32>
    %140 = tpu.matmul %139, %128, %cst_49 {dimension_numbers = #tpu.dot_dimension_numbers<[1], [0], [0], [1], [0, 0, 1, 1], [], []>} : vector<8x8xbf16>, vector<8x32xbf16>, vector<8x32xf32> -> vector<8x32xf32>
    %141 = tpu.reciprocal %138 {approx = true} : vector<8x1xf32> -> vector<8x1xf32>
    %142 = vector.broadcast %141 : vector<8x1xf32> to vector<8x32xf32>
    %143 = arith.mulf %140, %142 : vector<8x32xf32>
    %144 = arith.truncf %143 : vector<8x32xf32> to vector<8x32xbf16>
    %145 = vector.extract_strided_slice %96 {offsets = [32, 0], sizes = [32, 128], strides = [1, 1]} : vector<128x128xbf16> to vector<32x128xbf16>
    %cst_50 = arith.constant dense<0.000000e+00> : vector<8x128xf32>
    %146 = tpu.matmul %144, %145, %cst_50 {dimension_numbers = #tpu.dot_dimension_numbers<[1], [0], [0], [1], [0, 0, 1, 1], [], []>} : vector<8x32xbf16>, vector<32x128xbf16>, vector<8x128xf32> -> vector<8x128xf32>
    %147 = arith.addf %122, %146 : vector<8x128xf32>
    %148 = vector.extract_strided_slice %85 {offsets = [0, 64], sizes = [8, 32], strides = [1, 1]} : vector<8x128xf32> to vector<8x32xf32>
    %149 = arith.truncf %148 : vector<8x32xf32> to vector<8x32xbf16>
    %150 = vector.extract_strided_slice %91 {offsets = [0, 64], sizes = [8, 32], strides = [1, 1]} : vector<8x128xf32> to vector<8x32xf32>
    %151 = arith.truncf %150 : vector<8x32xf32> to vector<8x32xbf16>
    %152 = vector.extract_strided_slice %56 {offsets = [0, 64], sizes = [8, 32], strides = [1, 1]} : vector<8x128xf32> to vector<8x32xf32>
    %153 = arith.truncf %152 : vector<8x32xf32> to vector<8x32xbf16>
    %cst_51 = arith.constant dense<0.000000e+00> : vector<8x8xf32>
    %154 = tpu.matmul %149, %151, %cst_51 {dimension_numbers = #tpu.dot_dimension_numbers<[1], [1], [0], [0], [0, 0, 1, 0], [], []>} : vector<8x32xbf16>, vector<8x32xbf16>, vector<8x8xf32> -> vector<8x8xf32>
    %cst_52 = arith.constant -1.000000e+30 : f32
    %155 = vector.broadcast %cst_52 : f32 to vector<8x8xf32>
    %156 = arith.select %94, %154, %155 : vector<8x8xi1>, vector<8x8xf32>
    %cst_53 = arith.constant dense<0xFF800000> : vector<8xf32>
    %157 = vector.multi_reduction <maximumf>, %156, %cst_53 [1] : vector<8x8xf32> to vector<8xf32>
    %158 = vector.shape_cast %157 : vector<8xf32> to vector<8x1xf32>
    %159 = vector.broadcast %158 : vector<8x1xf32> to vector<8x8xf32>
    %160 = arith.subf %156, %159 : vector<8x8xf32>
    %161 = math.exp %160 : vector<8x8xf32>
    %cst_54 = arith.constant dense<0.000000e+00> : vector<8xf32>
    %162 = vector.multi_reduction <add>, %161, %cst_54 [1] : vector<8x8xf32> to vector<8xf32>
    %163 = vector.shape_cast %162 : vector<8xf32> to vector<8x1xf32>
    %164 = arith.truncf %161 : vector<8x8xf32> to vector<8x8xbf16>
    %cst_55 = arith.constant dense<0.000000e+00> : vector<8x32xf32>
    %165 = tpu.matmul %164, %153, %cst_55 {dimension_numbers = #tpu.dot_dimension_numbers<[1], [0], [0], [1], [0, 0, 1, 1], [], []>} : vector<8x8xbf16>, vector<8x32xbf16>, vector<8x32xf32> -> vector<8x32xf32>
    %166 = tpu.reciprocal %163 {approx = true} : vector<8x1xf32> -> vector<8x1xf32>
    %167 = vector.broadcast %166 : vector<8x1xf32> to vector<8x32xf32>
    %168 = arith.mulf %165, %167 : vector<8x32xf32>
    %169 = arith.truncf %168 : vector<8x32xf32> to vector<8x32xbf16>
    %170 = vector.extract_strided_slice %96 {offsets = [64, 0], sizes = [32, 128], strides = [1, 1]} : vector<128x128xbf16> to vector<32x128xbf16>
    %cst_56 = arith.constant dense<0.000000e+00> : vector<8x128xf32>
    %171 = tpu.matmul %169, %170, %cst_56 {dimension_numbers = #tpu.dot_dimension_numbers<[1], [0], [0], [1], [0, 0, 1, 1], [], []>} : vector<8x32xbf16>, vector<32x128xbf16>, vector<8x128xf32> -> vector<8x128xf32>
    %172 = arith.addf %147, %171 : vector<8x128xf32>
    %173 = vector.extract_strided_slice %85 {offsets = [0, 96], sizes = [8, 32], strides = [1, 1]} : vector<8x128xf32> to vector<8x32xf32>
    %174 = arith.truncf %173 : vector<8x32xf32> to vector<8x32xbf16>
    %175 = vector.extract_strided_slice %91 {offsets = [0, 96], sizes = [8, 32], strides = [1, 1]} : vector<8x128xf32> to vector<8x32xf32>
    %176 = arith.truncf %175 : vector<8x32xf32> to vector<8x32xbf16>
    %177 = vector.extract_strided_slice %56 {offsets = [0, 96], sizes = [8, 32], strides = [1, 1]} : vector<8x128xf32> to vector<8x32xf32>
    %178 = arith.truncf %177 : vector<8x32xf32> to vector<8x32xbf16>
    %cst_57 = arith.constant dense<0.000000e+00> : vector<8x8xf32>
    %179 = tpu.matmul %174, %176, %cst_57 {dimension_numbers = #tpu.dot_dimension_numbers<[1], [1], [0], [0], [0, 0, 1, 0], [], []>} : vector<8x32xbf16>, vector<8x32xbf16>, vector<8x8xf32> -> vector<8x8xf32>
    %cst_58 = arith.constant -1.000000e+30 : f32
    %180 = vector.broadcast %cst_58 : f32 to vector<8x8xf32>
    %181 = arith.select %94, %179, %180 : vector<8x8xi1>, vector<8x8xf32>
    %cst_59 = arith.constant dense<0xFF800000> : vector<8xf32>
    %182 = vector.multi_reduction <maximumf>, %181, %cst_59 [1] : vector<8x8xf32> to vector<8xf32>
    %183 = vector.shape_cast %182 : vector<8xf32> to vector<8x1xf32>
    %184 = vector.broadcast %183 : vector<8x1xf32> to vector<8x8xf32>
    %185 = arith.subf %181, %184 : vector<8x8xf32>
    %186 = math.exp %185 : vector<8x8xf32>
    %cst_60 = arith.constant dense<0.000000e+00> : vector<8xf32>
    %187 = vector.multi_reduction <add>, %186, %cst_60 [1] : vector<8x8xf32> to vector<8xf32>
    %188 = vector.shape_cast %187 : vector<8xf32> to vector<8x1xf32>
    %189 = arith.truncf %186 : vector<8x8xf32> to vector<8x8xbf16>
    %cst_61 = arith.constant dense<0.000000e+00> : vector<8x32xf32>
    %190 = tpu.matmul %189, %178, %cst_61 {dimension_numbers = #tpu.dot_dimension_numbers<[1], [0], [0], [1], [0, 0, 1, 1], [], []>} : vector<8x8xbf16>, vector<8x32xbf16>, vector<8x32xf32> -> vector<8x32xf32>
    %191 = tpu.reciprocal %188 {approx = true} : vector<8x1xf32> -> vector<8x1xf32>
    %192 = vector.broadcast %191 : vector<8x1xf32> to vector<8x32xf32>
    %193 = arith.mulf %190, %192 : vector<8x32xf32>
    %194 = arith.truncf %193 : vector<8x32xf32> to vector<8x32xbf16>
    %195 = vector.extract_strided_slice %96 {offsets = [96, 0], sizes = [32, 128], strides = [1, 1]} : vector<128x128xbf16> to vector<32x128xbf16>
    %cst_62 = arith.constant dense<0.000000e+00> : vector<8x128xf32>
    %196 = tpu.matmul %194, %195, %cst_62 {dimension_numbers = #tpu.dot_dimension_numbers<[1], [0], [0], [1], [0, 0, 1, 1], [], []>} : vector<8x32xbf16>, vector<32x128xbf16>, vector<8x128xf32> -> vector<8x128xf32>
    %197 = arith.addf %172, %196 : vector<8x128xf32>
    %198 = arith.truncf %53 : vector<8x512xf32> to vector<8x512xbf16>
    %c0_63 = arith.constant 0 : index
    %c0_64 = arith.constant 0 : index
    %c0_65 = arith.constant 0 : index
    %199 = vector.load %arg9[%c0_63, %c0_64, %c0_65] : memref<1x512x128xbf16, #tpu.memory_space<vmem>>, vector<1x512x128xbf16>
    %200 = vector.shape_cast %199 : vector<1x512x128xbf16> to vector<512x128xbf16>
    %cst_66 = arith.constant dense<0.000000e+00> : vector<8x128xf32>
    %201 = tpu.matmul %198, %200, %cst_66 {dimension_numbers = #tpu.dot_dimension_numbers<[1], [0], [0], [1], [0, 0, 1, 1], [], []>} : vector<8x512xbf16>, vector<512x128xbf16>, vector<8x128xf32> -> vector<8x128xf32>
    %c0_67 = arith.constant 0 : index
    %c0_68 = arith.constant 0 : index
    %c0_69 = arith.constant 0 : index
    %202 = vector.load %arg10[%c0_67, %c0_68, %c0_69] : memref<1x1x128xf32, #tpu.memory_space<vmem>>, vector<1x1x128xf32>
    %203 = vector.shape_cast %202 : vector<1x1x128xf32> to vector<1x128xf32>
    %204 = vector.broadcast %203 : vector<1x128xf32> to vector<8x128xf32>
    %205 = arith.addf %201, %204 : vector<8x128xf32>
    %206 = arith.addf %197, %205 : vector<8x128xf32>
    %207 = arith.addf %206, %3 : vector<8x128xf32>
    %c0_70 = arith.constant 0 : index
    %c0_71 = arith.constant 0 : index
    %208 = vector.load %arg11[%c0_70, %c0_71] : memref<8x128xf32, #tpu.memory_space<vmem>>, vector<8x128xf32>
    tpu.vector_store %arg11[%c0_70, %c0_71], %207 {strides = array<i32>} : memref<8x128xf32, #tpu.memory_space<vmem>>, vector<8x128xf32>,
    return
  }
  func.func @transform_0(%arg0: i32) -> (i32, i32) {
    %c0_i32 = arith.constant 0 : i32
    %c0_i32_0 = arith.constant 0 : i32
    %c0_i32_1 = arith.constant 0 : i32
    return %c0_i32, %c0_i32_0 : i32, i32
  }
  func.func @transform_1(%arg0: i32) -> (i32, i32) {
    %c0_i32 = arith.constant 0 : i32
    %c0_i32_0 = arith.constant 0 : i32
    %c0_i32_1 = arith.constant 0 : i32
    return %c0_i32, %c0_i32_0 : i32, i32
  }
  func.func @transform_2(%arg0: i32) -> (i32, i32) {
    %c0_i32 = arith.constant 0 : i32
    %c0_i32_0 = arith.constant 0 : i32
    %c0_i32_1 = arith.constant 0 : i32
    return %c0_i32, %c0_i32_0 : i32, i32
  }
  func.func @transform_3(%arg0: i32) -> (i32, i32, i32) {
    %c0_i32 = arith.constant 0 : i32
    %c0_i32_0 = arith.constant 0 : i32
    %c0_i32_1 = arith.constant 0 : i32
    return %arg0, %c0_i32, %c0_i32_0 : i32, i32, i32
  }
  func.func @transform_4(%arg0: i32) -> (i32, i32, i32) {
    %c0_i32 = arith.constant 0 : i32
    %c0_i32_0 = arith.constant 0 : i32
    %c0_i32_1 = arith.constant 0 : i32
    return %arg0, %c0_i32, %c0_i32_0 : i32, i32, i32
  }
  func.func @transform_5(%arg0: i32) -> (i32, i32, i32) {
    %c0_i32 = arith.constant 0 : i32
    %c0_i32_0 = arith.constant 0 : i32
    %c0_i32_1 = arith.constant 0 : i32
    return %arg0, %c0_i32, %c0_i32_0 : i32, i32, i32
  }
  func.func @transform_6(%arg0: i32) -> (i32, i32, i32) {
    %c0_i32 = arith.constant 0 : i32
    %c0_i32_0 = arith.constant 0 : i32
    %c0_i32_1 = arith.constant 0 : i32
    return %arg0, %c0_i32, %c0_i32_0 : i32, i32, i32
  }
  func.func @transform_7(%arg0: i32) -> (i32, i32, i32) {
    %c0_i32 = arith.constant 0 : i32
    %c0_i32_0 = arith.constant 0 : i32
    %c0_i32_1 = arith.constant 0 : i32
    return %arg0, %c0_i32, %c0_i32_0 : i32, i32, i32
  }
  func.func @transform_8(%arg0: i32) -> (i32, i32, i32) {
    %c0_i32 = arith.constant 0 : i32
    %c0_i32_0 = arith.constant 0 : i32
    %c0_i32_1 = arith.constant 0 : i32
    return %arg0, %c0_i32, %c0_i32_0 : i32, i32, i32
  }
  func.func @transform_9(%arg0: i32) -> (i32, i32, i32) {
    %c0_i32 = arith.constant 0 : i32
    %c0_i32_0 = arith.constant 0 : i32
    %c0_i32_1 = arith.constant 0 : i32
    return %arg0, %c0_i32, %c0_i32_0 : i32, i32, i32
  }
  func.func @transform_10(%arg0: i32) -> (i32, i32) {
    %c0_i32 = arith.constant 0 : i32
    %c0_i32_0 = arith.constant 0 : i32
    %c0_i32_1 = arith.constant 0 : i32
    return %c0_i32, %c0_i32_0 : i32, i32
  }
}

</mosaic_0001>

<llo_original>
// kernel: _lambda_.3
$region0: #{_lambda_.3}
  #allocation0 [shape = 'u32[]', space=smem, size = 0x4, offset = 0x4, fixed_abs, tag = 'smem constant byte address 0x4 - core index']
  #allocation1 [shape = 'u32[144,128]{1,0:T(1,128)}', space=vmem, size = 0x12000, scoped, tag = 'internal scratch']
  %s0 = inlined_call_operand.vmem [shape: f32[8,128], index: 0, kind: input, shape index: {}]
  %s1 = inlined_call_operand.vmem [shape: f32[1,128], index: 1, kind: input, shape index: {}]
  %s2 = inlined_call_operand.vmem [shape: f32[1,128], index: 2, kind: input, shape index: {}]
  %s3 = inlined_call_operand.vmem [shape: bf16[128,256], index: 3, kind: input, shape index: {}]
  %s4 = inlined_call_operand.vmem [shape: f32[1,256], index: 4, kind: input, shape index: {}]
  %s5 = inlined_call_operand.vmem [shape: f32[8,256], index: 5, kind: output, shape index: {}]
  %s6 = sld [smem:[#allocation0]]
  $region30: #{_lambda_.3} parent=0
    _
  %s8 = ssub.s32 1, %s6
  %s9 = scalar_select 0, %s8, %s6
  // Predicated region
  $region2: #{_lambda_.3} parent=0 // pred_check
    _
  $region3: #{_lambda_.3} parent=0 // pred_check_branch
    %11 = sbr.rel (0) target = $region5
  $region4: #{_lambda_.3} parent=0 // pred_region
    _
  $region5: #{_lambda_.3} parent=0 // pred_fallthru
    _
  // Predicated region
  $region6: #{_lambda_.3} parent=0 // pred_check
    _
  $region7: #{_lambda_.3} parent=0 // pred_check_branch
    %13 = sbr.rel (0) target = $region9
  $region8: #{_lambda_.3} parent=0 // pred_region
    _
  $region9: #{_lambda_.3} parent=0 // pred_fallthru
    _
  // Predicated region
  $region10: #{_lambda_.3} parent=0 // pred_check
    _
  $region11: #{_lambda_.3} parent=0 // pred_check_branch
    %15 = sbr.rel (0) target = $region13
  $region12: #{_lambda_.3} parent=0 // pred_region
    _
  $region13: #{_lambda_.3} parent=0 // pred_fallthru
    _
  // Predicated region
  $region14: #{_lambda_.3} parent=0 // pred_check
    _
  $region15: #{_lambda_.3} parent=0 // pred_check_branch
    %17 = sbr.rel (0) target = $region17
  $region16: #{_lambda_.3} parent=0 // pred_region
    _
  $region17: #{_lambda_.3} parent=0 // pred_fallthru
    _
  // Predicated region
  $region18: #{_lambda_.3} parent=0 // pred_check
    _
  $region19: #{_lambda_.3} parent=0 // pred_check_branch
    %19 = sbr.rel (0) target = $region21
  $region20: #{_lambda_.3} parent=0 // pred_region
    _
  $region21: #{_lambda_.3} parent=0 // pred_fallthru
    _
  %v21 = vld [vmem:[%s0] sm:$0xff]
  %22 = vadd.xlane.f32.xlu0 %v21
  %v23 = vpop.xlane.xlu0 %22
  %v24 = vrcp.pop 128.0
  %v25 = vmul.f32 %v23, %v24
  %v26 = vsub.f32 %v21, %v25
  %v27 = vmul.f32 %v26, %v26
  %28 = vadd.xlane.f32.xlu0 %v27
  %v29 = vpop.xlane.xlu0 %28
  %v30 = vmul.f32 %v29, %v24
  %v31 = vadd.f32 %v30, 1e-05
  %v32 = vrsqrt.pop %v31
  %v33 = vmul.f32 %v26, %v32
  %v34 = vld [vmem:[%s1] sm:$0x1]
  %v36 = vlaneseq
  %v37 = vshrl.u32 %v36, 7
  %v38 = vsub.s32 0, %v37
  %v39 = vrot.slane %v34, %v38
  %v41 = vmul.f32 %v33, %v39
  %v42 = vld [vmem:[%s2] sm:$0x1]
  %v44 = vlaneseq
  %v45 = vshrl.u32 %v44, 7
  %v46 = vsub.s32 0, %v45
  %v47 = vrot.slane %v42, %v46
  %v49 = vadd.f32 %v41, %v47
  %v50 = vpack.c.bf16 %v49, %v49
  %v51 = vld [vmem:[%s3] sm:$0xff]
  %v52 = vld [vmem:[%s3 + $0x8] sm:$0xff]
  %v53 = vld [vmem:[%s3 + $0x10] sm:$0xff]
  %v54 = vld [vmem:[%s3 + $0x18] sm:$0xff]
  %v55 = vld [vmem:[%s3 + $0x20] sm:$0xff]
  %v56 = vld [vmem:[%s3 + $0x28] sm:$0xff]
  %v57 = vld [vmem:[%s3 + $0x30] sm:$0xff]
  %v58 = vld [vmem:[%s3 + $0x38] sm:$0xff]
  %v59 = vld [vmem:[%s3 + $0x40] sm:$0xff]
  %v60 = vld [vmem:[%s3 + $0x48] sm:$0xff]
  %v61 = vld [vmem:[%s3 + $0x50] sm:$0xff]
  %v62 = vld [vmem:[%s3 + $0x58] sm:$0xff]
  %v63 = vld [vmem:[%s3 + $0x60] sm:$0xff]
  %v64 = vld [vmem:[%s3 + $0x68] sm:$0xff]
  %v65 = vld [vmem:[%s3 + $0x70] sm:$0xff]
  %v66 = vld [vmem:[%s3 + $0x78] sm:$0xff]
  %v67 = vld [vmem:[%s4] sm:$0x3]
  %v69 = vlaneseq
  %v70 = vshrl.u32 %v69, 7
  %v71 = vsub.s32 0, %v70
  %v72 = vrot.slane %v67, %v71
  %v73 = vlaneseq
  %v74 = vshrl.u32 %v73, 7
  %v75 = vsub.s32 1, %v74
  %v76 = vrot.slane %v67, %v75
  %v95 = vunpack.c.l.b16 %v51
  %v96 = vunpack.c.h.b16 %v51
  %v97 = vunpack.c.l.b16 %v52
  %v98 = vunpack.c.h.b16 %v52
  %v99 = vunpack.c.l.b16 %v53
  %v100 = vunpack.c.h.b16 %v53
  %v101 = vunpack.c.l.b16 %v54
  %v102 = vunpack.c.h.b16 %v54
  %v103 = vunpack.c.l.b16 %v55
  %v104 = vunpack.c.h.b16 %v55
  %v105 = vunpack.c.l.b16 %v56
  %v106 = vunpack.c.h.b16 %v56
  %v107 = vunpack.c.l.b16 %v57
  %v108 = vunpack.c.h.b16 %v57
  %v109 = vunpack.c.l.b16 %v58
  %v110 = vunpack.c.h.b16 %v58
  %v111 = vunpack.c.l.b16 %v59
  %v112 = vunpack.c.h.b16 %v59
  %v113 = vunpack.c.l.b16 %v60
  %v114 = vunpack.c.h.b16 %v60
  %v115 = vunpack.c.l.b16 %v61
  %v116 = vunpack.c.h.b16 %v61
  %v117 = vunpack.c.l.b16 %v62
  %v118 = vunpack.c.h.b16 %v62
  %v119 = vunpack.c.l.b16 %v63
  %v120 = vunpack.c.h.b16 %v63
  %v121 = vunpack.c.l.b16 %v64
  %v122 = vunpack.c.h.b16 %v64
  %v123 = vunpack.c.l.b16 %v65
  %v124 = vunpack.c.h.b16 %v65
  %v125 = vunpack.c.l.b16 %v66
  %v126 = vunpack.c.h.b16 %v66
  %v127 = vpack.c.b16 %v97, %v95
  %v128 = vpack.c.b16 %v98, %v96
  %v129 = vpack.c.b16 %v101, %v99
  %v130 = vpack.c.b16 %v102, %v100
  %v131 = vpack.c.b16 %v105, %v103
  %v132 = vpack.c.b16 %v106, %v104
  %v133 = vpack.c.b16 %v109, %v107
  %v134 = vpack.c.b16 %v110, %v108
  %v135 = vpack.c.b16 %v113, %v111
  %v136 = vpack.c.b16 %v114, %v112
  %v137 = vpack.c.b16 %v117, %v115
  %v138 = vpack.c.b16 %v118, %v116
  %v139 = vpack.c.b16 %v121, %v119
  %v140 = vpack.c.b16 %v122, %v120
  %v141 = vpack.c.b16 %v125, %v123
  %v142 = vpack.c.b16 %v126, %v124
  %159 = vmatprep.subr.bf16.mxu0 %v128
  %160 = vmatpush1.bf16.msra.mxu0 %v127
  %161 = vmatprep.subr.bf16.mxu0 %v130
  %162 = vmatpush1.bf16.msra.mxu0 %v129
  %163 = vmatprep.subr.bf16.mxu0 %v132
  %164 = vmatpush1.bf16.msra.mxu0 %v131
  %165 = vmatprep.subr.bf16.mxu0 %v134
  %166 = vmatpush1.bf16.msra.mxu0 %v133
  %167 = vmatprep.subr.bf16.mxu0 %v136
  %168 = vmatpush1.bf16.msra.mxu0 %v135
  %169 = vmatprep.subr.bf16.mxu0 %v138
  %170 = vmatpush1.bf16.msra.mxu0 %v137
  %171 = vmatprep.subr.bf16.mxu0 %v140
  %172 = vmatpush1.bf16.msra.mxu0 %v139
  %173 = vmatprep.subr.bf16.mxu0 %v142
  %174 = vmatpush1.bf16.msra.mxu0 %v141
  %175 = vmatprep.subr.bf16.mxu0 0
  %176 = vmatpush1.bf16.msra.mxu0 0
  %177 = vmatprep.subr.bf16.mxu0 0
  %178 = vmatpush1.bf16.msra.mxu0 0
  %179 = vmatprep.subr.bf16.mxu0 0
  %180 = vmatpush1.bf16.msra.mxu0 0
  %181 = vmatprep.subr.bf16.mxu0 0
  %182 = vmatpush1.bf16.msra.mxu0 0
  %183 = vmatprep.subr.bf16.mxu0 0
  %184 = vmatpush1.bf16.msra.mxu0 0
  %185 = vmatprep.subr.bf16.mxu0 0
  %186 = vmatpush1.bf16.msra.mxu0 0
  %187 = vmatprep.subr.bf16.mxu0 0
  %188 = vmatpush1.bf16.msra.mxu0 0
  %189 = vmatprep.subr.bf16.mxu0 0
  %190 = vmatpush1.bf16.msra.mxu0 0
  %191 = vmatprep.mubr.bf16.mxu0 0
  %192 = vmatmul.mubr.bf16.gmra.mrb[0].mxu0 %v50
  %v193 = vpop.f32.mrb[0].mxu0
  %v194 = vadd.f32 %v72, %v193
  %v195 = vpop.f32.mrb[0].mxu0
  %v196 = vadd.f32 %v76, %v195
  %v197 = vpop.f32.mrb[0].mxu0
  %v198 = vpop.f32.mrb[0].mxu0
  %199 = vdwg.mxu0
  %200 = vst [vmem:[%s5] sm:$0xff] %v194
  %201 = vst [vmem:[%s5 + $0x8] sm:$0xff] %v196
  // Predicated region
  $region22: #{_lambda_.3} parent=0 // pred_check
    _
  $region23: #{_lambda_.3} parent=0 // pred_check_branch
    %203 = sbr.rel (0) target = $region25
  $region24: #{_lambda_.3} parent=0 // pred_region
    _
  $region25: #{_lambda_.3} parent=0 // pred_fallthru
    _
  // Predicated region
  $region26: #{_lambda_.3} parent=0 // pred_check
    _
  $region27: #{_lambda_.3} parent=0 // pred_check_branch
    %205 = sbr.rel (0) target = $region29
  $region28: #{_lambda_.3} parent=0 // pred_region
    _
  $region29: #{_lambda_.3} parent=0 // pred_fallthru
    _

// kernel: _lambda_.2
$region0: #{_lambda_.2}
  #allocation0 [shape = 'u32[]', space=smem, size = 0x4, offset = 0x4, fixed_abs, tag = 'smem constant byte address 0x4 - core index']
  #allocation1 [shape = 'u32[144,128]{1,0:T(1,128)}', space=vmem, size = 0x12000, scoped, tag = 'internal scratch']
  %s0 = inlined_call_operand.vmem [shape: f32[8,128], index: 0, kind: input, shape index: {}]
  %s1 = inlined_call_operand.vmem [shape: f32[8,32], index: 1, kind: input, shape index: {}]
  %s2 = inlined_call_operand.vmem [shape: f32[8,32], index: 2, kind: input, shape index: {}]
  %s3 = inlined_call_operand.vmem [shape: f32[2,1,128], index: 3, kind: input, shape index: {}]
  %s4 = inlined_call_operand.vmem [shape: f32[2,1,128], index: 4, kind: input, shape index: {}]
  %s5 = inlined_call_operand.vmem [shape: bf16[2,128,896], index: 5, kind: input, shape index: {}]
  %s6 = inlined_call_operand.vmem [shape: f32[2,1,512], index: 6, kind: input, shape index: {}]
  %s7 = inlined_call_operand.vmem [shape: bf16[2,128,128], index: 7, kind: input, shape index: {}]
  %s8 = inlined_call_operand.vmem [shape: bf16[2,512,128], index: 8, kind: input, shape index: {}]
  %s9 = inlined_call_operand.vmem [shape: f32[2,1,128], index: 9, kind: input, shape index: {}]
  %s10 = inlined_call_operand.vmem [shape: f32[8,128], index: 10, kind: output, shape index: {}]
  %s11 = sld [smem:[#allocation0]]
  $region77: #{_lambda_.2} parent=0
    _
  %s13 = ssub.s32 1, %s11
  %s14 = scalar_select 0, %s13, %s11
  loop: start=0, step=1, limit=4
  $region2: #{_lambda_.2} parent=0 // loop_pre_header
    _
  $region3: #{_lambda_.2} parent=0 // loop_header
    %s16 = sphi 0, %s20
    %p17 = scmp.ge.s32.totalorder %s16, 4
    %s24 = sphi 0, %s24
    %s26 = sphi 0, %s24
    %s27 = sphi 0, %s26
    %s41 = sphi 0, %s27
    %s45 = sphi 0, %s45
    %s47 = sphi 0, %s45
    %s48 = sphi 0, %s47
    %s62 = sphi 0, %s48
    %s66 = sphi 0, %s66
    %s68 = sphi 0, %s66
    %s69 = sphi 0, %s68
    %s83 = sphi 0, %s69
    %s89 = sphi 0, %s91
    %s92 = sphi 0, %s89
    %s93 = sphi 0, %s92
    %s109 = sphi 0, %s93
    %s115 = sphi 0, %s117
    %s118 = sphi 0, %s115
    %s119 = sphi 0, %s118
    %s135 = sphi 0, %s119
    %s141 = sphi 0, %s143
    %s144 = sphi 0, %s141
    %s145 = sphi 0, %s144
    %s161 = sphi 0, %s145
    %s167 = sphi 0, %s169
    %s170 = sphi 0, %s167
    %s171 = sphi 0, %s170
    %s187 = sphi 0, %s171
    %s193 = sphi 0, %s195
    %s196 = sphi 0, %s193
    %s197 = sphi 0, %s196
    %s213 = sphi 0, %s197
    %s219 = sphi 0, %s221
    %s222 = sphi 0, %s219
    %s223 = sphi 0, %s222
    %s239 = sphi 0, %s223
    %s245 = sphi 0, %s247
    %s248 = sphi 0, %s245
    %s249 = sphi 0, %s248
    %s265 = sphi 0, %s249
    %s269 = sphi 0, %s269
    %s271 = sphi 0, %s269
    %s272 = sphi 0, %s271
    %s286 = sphi 0, %s272
  $region4: #{_lambda_.2} parent=0 // loop_header_branch
    %19 = sbr.rel (%p17) target = $region8
  $region5: #{_lambda_.2} parent=0 // loop_body
    %s21 = ssub.s32 %s16, 1
    %s22 = ssub.s32 %s16, 2
    %s23 = sadd.s32 %s16, 1
    %s25 = sadd.s32 %s24, 1
    %p28 = scmp.eq.s32.totalorder %s16, 1
    %p29 = scmp.ne.s32.totalorder %s24, %s26
    %p30 = scmp.eq.s32.totalorder %s16, 0
    %p31 = por %p29, %p30
    %p32 = scmp.ne.s32.totalorder %s24, %s26
    %p33 = scmp.eq.s32.totalorder %s21, 1
    %p34 = por %p32, %p33
    %p35 = scmp.ne.s32.totalorder %s26, %s27
    %p36 = scmp.eq.s32.totalorder %s21, 0
    %p37 = por %p35, %p36
    %p38 = scmp.ne.s32.totalorder %s26, %s27
    %p39 = scmp.eq.s32.totalorder %s22, 1
    %p40 = por %p38, %p39
    %p42 = scmp.ne.s32.totalorder %s27, %s41
    %p43 = scmp.eq.s32.totalorder %s22, 0
    %p44 = por %p42, %p43
    %s46 = sadd.s32 %s45, 1
    %p49 = scmp.eq.s32.totalorder %s16, 1
    %p50 = scmp.ne.s32.totalorder %s45, %s47
    %p51 = scmp.eq.s32.totalorder %s16, 0
    %p52 = por %p50, %p51
    %p53 = scmp.ne.s32.totalorder %s45, %s47
    %p54 = scmp.eq.s32.totalorder %s21, 1
    %p55 = por %p53, %p54
    %p56 = scmp.ne.s32.totalorder %s47, %s48
    %p57 = scmp.eq.s32.totalorder %s21, 0
    %p58 = por %p56, %p57
    %p59 = scmp.ne.s32.totalorder %s47, %s48
    %p60 = scmp.eq.s32.totalorder %s22, 1
    %p61 = por %p59, %p60
    %p63 = scmp.ne.s32.totalorder %s48, %s62
    %p64 = scmp.eq.s32.totalorder %s22, 0
    %p65 = por %p63, %p64
    %s67 = sadd.s32 %s66, 1
    %p70 = scmp.eq.s32.totalorder %s16, 1
    %p71 = scmp.ne.s32.totalorder %s66, %s68
    %p72 = scmp.eq.s32.totalorder %s16, 0
    %p73 = por %p71, %p72
    %p74 = scmp.ne.s32.totalorder %s66, %s68
    %p75 = scmp.eq.s32.totalorder %s21, 1
    %p76 = por %p74, %p75
    %p77 = scmp.ne.s32.totalorder %s68, %s69
    %p78 = scmp.eq.s32.totalorder %s21, 0
    %p79 = por %p77, %p78
    %p80 = scmp.ne.s32.totalorder %s68, %s69
    %p81 = scmp.eq.s32.totalorder %s22, 1
    %p82 = por %p80, %p81
    %p84 = scmp.ne.s32.totalorder %s69, %s83
    %p85 = scmp.eq.s32.totalorder %s22, 0
    %p86 = por %p84, %p85
    %s87 = ssub.s32 %s16, %s23
    %p88 = scmp.eq.s32.totalorder %s87, 0
    %s90 = sadd.s32 %s89, 1
    %s91 = scalar_select %p88, %s89, %s90
    %p94 = pneg %p88
    %p95 = scmp.eq.s32.totalorder %s16, 1
    %p96 = por %p94, %p95
    %p97 = scmp.ne.s32.totalorder %s89, %s92
    %p98 = scmp.eq.s32.totalorder %s16, 0
    %p99 = por %p97, %p98
    %p100 = scmp.ne.s32.totalorder %s89, %s92
    %p101 = scmp.eq.s32.totalorder %s21, 1
    %p102 = por %p100, %p101
    %p103 = scmp.ne.s32.totalorder %s92, %s93
    %p104 = scmp.eq.s32.totalorder %s21, 0
    %p105 = por %p103, %p104
    %p106 = scmp.ne.s32.totalorder %s92, %s93
    %p107 = scmp.eq.s32.totalorder %s22, 1
    %p108 = por %p106, %p107
    %p110 = scmp.ne.s32.totalorder %s93, %s109
    %p111 = scmp.eq.s32.totalorder %s22, 0
    %p112 = por %p110, %p111
    %s113 = ssub.s32 %s16, %s23
    %p114 = scmp.eq.s32.totalorder %s113, 0
    %s116 = sadd.s32 %s115, 1
    %s117 = scalar_select %p114, %s115, %s116
    %p120 = pneg %p114
    %p121 = scmp.eq.s32.totalorder %s16, 1
    %p122 = por %p120, %p121
    %p123 = scmp.ne.s32.totalorder %s115, %s118
    %p124 = scmp.eq.s32.totalorder %s16, 0
    %p125 = por %p123, %p124
    %p126 = scmp.ne.s32.totalorder %s115, %s118
    %p127 = scmp.eq.s32.totalorder %s21, 1
    %p128 = por %p126, %p127
    %p129 = scmp.ne.s32.totalorder %s118, %s119
    %p130 = scmp.eq.s32.totalorder %s21, 0
    %p131 = por %p129, %p130
    %p132 = scmp.ne.s32.totalorder %s118, %s119
    %p133 = scmp.eq.s32.totalorder %s22, 1
    %p134 = por %p132, %p133
    %p136 = scmp.ne.s32.totalorder %s119, %s135
    %p137 = scmp.eq.s32.totalorder %s22, 0
    %p138 = por %p136, %p137
    %s139 = ssub.s32 %s16, %s23
    %p140 = scmp.eq.s32.totalorder %s139, 0
    %s142 = sadd.s32 %s141, 1
    %s143 = scalar_select %p140, %s141, %s142
    %p146 = pneg %p140
    %p147 = scmp.eq.s32.totalorder %s16, 1
    %p148 = por %p146, %p147
    %p149 = scmp.ne.s32.totalorder %s141, %s144
    %p150 = scmp.eq.s32.totalorder %s16, 0
    %p151 = por %p149, %p150
    %p152 = scmp.ne.s32.totalorder %s141, %s144
    %p153 = scmp.eq.s32.totalorder %s21, 1
    %p154 = por %p152, %p153
    %p155 = scmp.ne.s32.totalorder %s144, %s145
    %p156 = scmp.eq.s32.totalorder %s21, 0
    %p157 = por %p155, %p156
    %p158 = scmp.ne.s32.totalorder %s144, %s145
    %p159 = scmp.eq.s32.totalorder %s22, 1
    %p160 = por %p158, %p159
    %p162 = scmp.ne.s32.totalorder %s145, %s161
    %p163 = scmp.eq.s32.totalorder %s22, 0
    %p164 = por %p162, %p163
    %s165 = ssub.s32 %s16, %s23
    %p166 = scmp.eq.s32.totalorder %s165, 0
    %s168 = sadd.s32 %s167, 1
    %s169 = scalar_select %p166, %s167, %s168
    %p172 = pneg %p166
    %p173 = scmp.eq.s32.totalorder %s16, 1
    %p174 = por %p172, %p173
    %p175 = scmp.ne.s32.totalorder %s167, %s170
    %p176 = scmp.eq.s32.totalorder %s16, 0
    %p177 = por %p175, %p176
    %p178 = scmp.ne.s32.totalorder %s167, %s170
    %p179 = scmp.eq.s32.totalorder %s21, 1
    %p180 = por %p178, %p179
    %p181 = scmp.ne.s32.totalorder %s170, %s171
    %p182 = scmp.eq.s32.totalorder %s21, 0
    %p183 = por %p181, %p182
    %p184 = scmp.ne.s32.totalorder %s170, %s171
    %p185 = scmp.eq.s32.totalorder %s22, 1
    %p186 = por %p184, %p185
    %p188 = scmp.ne.s32.totalorder %s171, %s187
    %p189 = scmp.eq.s32.totalorder %s22, 0
    %p190 = por %p188, %p189
    %s191 = ssub.s32 %s16, %s23
    %p192 = scmp.eq.s32.totalorder %s191, 0
    %s194 = sadd.s32 %s193, 1
    %s195 = scalar_select %p192, %s193, %s194
    %p198 = pneg %p192
    %p199 = scmp.eq.s32.totalorder %s16, 1
    %p200 = por %p198, %p199
    %p201 = scmp.ne.s32.totalorder %s193, %s196
    %p202 = scmp.eq.s32.totalorder %s16, 0
    %p203 = por %p201, %p202
    %p204 = scmp.ne.s32.totalorder %s193, %s196
    %p205 = scmp.eq.s32.totalorder %s21, 1
    %p206 = por %p204, %p205
    %p207 = scmp.ne.s32.totalorder %s196, %s197
    %p208 = scmp.eq.s32.totalorder %s21, 0
    %p209 = por %p207, %p208
    %p210 = scmp.ne.s32.totalorder %s196, %s197
    %p211 = scmp.eq.s32.totalorder %s22, 1
    %p212 = por %p210, %p211
    %p214 = scmp.ne.s32.totalorder %s197, %s213
    %p215 = scmp.eq.s32.totalorder %s22, 0
    %p216 = por %p214, %p215
    %s217 = ssub.s32 %s16, %s23
    %p218 = scmp.eq.s32.totalorder %s217, 0
    %s220 = sadd.s32 %s219, 1
    %s221 = scalar_select %p218, %s219, %s220
    %p224 = pneg %p218
    %p225 = scmp.eq.s32.totalorder %s16, 1
    %p226 = por %p224, %p225
    %p227 = scmp.ne.s32.totalorder %s219, %s222
    %p228 = scmp.eq.s32.totalorder %s16, 0
    %p229 = por %p227, %p228
    %p230 = scmp.ne.s32.totalorder %s219, %s222
    %p231 = scmp.eq.s32.totalorder %s21, 1
    %p232 = por %p230, %p231
    %p233 = scmp.ne.s32.totalorder %s222, %s223
    %p234 = scmp.eq.s32.totalorder %s21, 0
    %p235 = por %p233, %p234
    %p236 = scmp.ne.s32.totalorder %s222, %s223
    %p237 = scmp.eq.s32.totalorder %s22, 1
    %p238 = por %p236, %p237
    %p240 = scmp.ne.s32.totalorder %s223, %s239
    %p241 = scmp.eq.s32.totalorder %s22, 0
    %p242 = por %p240, %p241
    %s243 = ssub.s32 %s16, %s23
    %p244 = scmp.eq.s32.totalorder %s243, 0
    %s246 = sadd.s32 %s245, 1
    %s247 = scalar_select %p244, %s245, %s246
    %p250 = pneg %p244
    %p251 = scmp.eq.s32.totalorder %s16, 1
    %p252 = por %p250, %p251
    %p253 = scmp.ne.s32.totalorder %s245, %s248
    %p254 = scmp.eq.s32.totalorder %s16, 0
    %p255 = por %p253, %p254
    %p256 = scmp.ne.s32.totalorder %s245, %s248
    %p257 = scmp.eq.s32.totalorder %s21, 1
    %p258 = por %p256, %p257
    %p259 = scmp.ne.s32.totalorder %s248, %s249
    %p260 = scmp.eq.s32.totalorder %s21, 0
    %p261 = por %p259, %p260
    %p262 = scmp.ne.s32.totalorder %s248, %s249
    %p263 = scmp.eq.s32.totalorder %s22, 1
    %p264 = por %p262, %p263
    %p266 = scmp.ne.s32.totalorder %s249, %s265
    %p267 = scmp.eq.s32.totalorder %s22, 0
    %p268 = por %p266, %p267
    %s270 = sadd.s32 %s269, 1
    %p273 = scmp.eq.s32.totalorder %s16, 1
    %p274 = scmp.ne.s32.totalorder %s269, %s271
    %p275 = scmp.eq.s32.totalorder %s16, 0
    %p276 = por %p274, %p275
    %p277 = scmp.ne.s32.totalorder %s269, %s271
    %p278 = scmp.eq.s32.totalorder %s21, 1
    %p279 = por %p277, %p278
    %p280 = scmp.ne.s32.totalorder %s271, %s272
    %p281 = scmp.eq.s32.totalorder %s21, 0
    %p282 = por %p280, %p281
    %p283 = scmp.ne.s32.totalorder %s271, %s272
    %p284 = scmp.eq.s32.totalorder %s22, 1
    %p285 = por %p283, %p284
    %p287 = scmp.ne.s32.totalorder %s272, %s286
    %p288 = scmp.eq.s32.totalorder %s22, 0
    %p289 = por %p287, %p288
    %p290 = scmp.le.s32.totalorder 1, %s16
    %p291 = scmp.lt.s32.totalorder %s16, 3
    %p292 = pnand %p290, %p291
    %p293 = pneg %p292
    // Predicated region
    $region9: #{_lambda_.2} parent=5 // pred_check
      _
    $region10: #{_lambda_.2} parent=5 // pred_check_branch
      %295 = sbr.rel (%p292) target = $region12
    $region11: #{_lambda_.2} parent=5 // pred_region
      %s296 = ssub.s32 %s16, 1
      // Predicated region
      $region13: #{_lambda_.2} parent=11 // pred_check
        %p297 = pneg %p37
      $region14: #{_lambda_.2} parent=11 // pred_check_branch
        %299 = sbr.rel (%p297) target = $region16
      $region15: #{_lambda_.2} parent=11 // pred_region
        _
      $region16: #{_lambda_.2} parent=11 // pred_fallthru
        _
      // Predicated region
      $region17: #{_lambda_.2} parent=11 // pred_check
        %p300 = pneg %p58
      $region18: #{_lambda_.2} parent=11 // pred_check_branch
        %302 = sbr.rel (%p300) target = $region20
      $region19: #{_lambda_.2} parent=11 // pred_region
        _
      $region20: #{_lambda_.2} parent=11 // pred_fallthru
        _
      // Predicated region
      $region21: #{_lambda_.2} parent=11 // pred_check
        %p303 = pneg %p79
      $region22: #{_lambda_.2} parent=11 // pred_check_branch
        %305 = sbr.rel (%p303) target = $region24
      $region23: #{_lambda_.2} parent=11 // pred_region
        _
      $region24: #{_lambda_.2} parent=11 // pred_fallthru
        _
    $region12: #{_lambda_.2} parent=5 // pred_fallthru
      _
    %p306 = scmp.lt.s32.totalorder %s16, 2
    // Predicated region
    $region25: #{_lambda_.2} parent=5 // pred_check
      %p307 = pneg %p306
    $region26: #{_lambda_.2} parent=5 // pred_check_branch
      %309 = sbr.rel (%p307) target = $region28
    $region27: #{_lambda_.2} parent=5 // pred_region
      // Predicated region
      $region29: #{_lambda_.2} parent=27 // pred_check
        %p310 = pneg %p99
      $region30: #{_lambda_.2} parent=27 // pred_check_branch
        %312 = sbr.rel (%p310) target = $region32
      $region31: #{_lambda_.2} parent=27 // pred_region
        %p313 = scmp.lt.s32.totalorder %s16, 1
        %s314 = scalar_select %p313, %s16, 1
        %s315 = scalar_lea.vmem %s3, %s314
      $region32: #{_lambda_.2} parent=27 // pred_fallthru
        _
      // Predicated region
      $region33: #{_lambda_.2} parent=27 // pred_check
        %p316 = pneg %p125
      $region34: #{_lambda_.2} parent=27 // pred_check_branch
        %318 = sbr.rel (%p316) target = $region36
      $region35: #{_lambda_.2} parent=27 // pred_region
        %p319 = scmp.lt.s32.totalorder %s16, 1
        %s320 = scalar_select %p319, %s16, 1
        %s321 = scalar_lea.vmem %s4, %s320
      $region36: #{_lambda_.2} parent=27 // pred_fallthru
        _
      // Predicated region
      $region37: #{_lambda_.2} parent=27 // pred_check
        %p322 = pneg %p151
      $region38: #{_lambda_.2} parent=27 // pred_check_branch
        %324 = sbr.rel (%p322) target = $region40
      $region39: #{_lambda_.2} parent=27 // pred_region
        %p325 = scmp.lt.s32.totalorder %s16, 1
        %s326 = scalar_select %p325, %s16, 1
        %s327 = smul.addr %s326, 112
        %s328 = smul.addr %s327, 4
        %s329 = scalar_lea.vmem %s5, %s328
      $region40: #{_lambda_.2} parent=27 // pred_fallthru
        _
      // Predicated region
      $region41: #{_lambda_.2} parent=27 // pred_check
        %p330 = pneg %p177
      $region42: #{_lambda_.2} parent=27 // pred_check_branch
        %332 = sbr.rel (%p330) target = $region44
      $region43: #{_lambda_.2} parent=27 // pred_region
        %p333 = scmp.lt.s32.totalorder %s16, 1
        %s334 = scalar_select %p333, %s16, 1
        %s335 = smul.addr %s334, 4
        %s336 = scalar_lea.vmem %s6, %s335
      $region44: #{_lambda_.2} parent=27 // pred_fallthru
        _
      // Predicated region
      $region45: #{_lambda_.2} parent=27 // pred_check
        %p337 = pneg %p203
      $region46: #{_lambda_.2} parent=27 // pred_check_branch
        %339 = sbr.rel (%p337) target = $region48
      $region47: #{_lambda_.2} parent=27 // pred_region
        %p340 = scmp.lt.s32.totalorder %s16, 1
        %s341 = scalar_select %p340, %s16, 1
        %s342 = smul.addr %s341, 16
        %s343 = smul.addr %s342, 4
        %s344 = scalar_lea.vmem %s7, %s343
      $region48: #{_lambda_.2} parent=27 // pred_fallthru
        _
      // Predicated region
      $region49: #{_lambda_.2} parent=27 // pred_check
        %p345 = pneg %p229
      $region50: #{_lambda_.2} parent=27 // pred_check_branch
        %347 = sbr.rel (%p345) target = $region52
      $region51: #{_lambda_.2} parent=27 // pred_region
        %p348 = scmp.lt.s32.totalorder %s16, 1
        %s349 = scalar_select %p348, %s16, 1
        %s350 = smul.addr %s349, 64
        %s351 = smul.addr %s350, 4
        %s352 = scalar_lea.vmem %s8, %s351
      $region52: #{_lambda_.2} parent=27 // pred_fallthru
        _
      // Predicated region
      $region53: #{_lambda_.2} parent=27 // pred_check
        %p353 = pneg %p255
      $region54: #{_lambda_.2} parent=27 // pred_check_branch
        %355 = sbr.rel (%p353) target = $region56
      $region55: #{_lambda_.2} parent=27 // pred_region
        %p356 = scmp.lt.s32.totalorder %s16, 1
        %s357 = scalar_select %p356, %s16, 1
        %s358 = scalar_lea.vmem %s9, %s357
      $region56: #{_lambda_.2} parent=27 // pred_fallthru
        _
    $region28: #{_lambda_.2} parent=5 // pred_fallthru
      _
    %p359 = scmp.le.s32.totalorder 1, %s16
    %p360 = scmp.lt.s32.totalorder %s16, 3
    %p361 = pnand %p359, %p360
    %p362 = pneg %p361
    // Predicated region
    $region57: #{_lambda_.2} parent=5 // pred_check
      _
    $region58: #{_lambda_.2} parent=5 // pred_check_branch
      %364 = sbr.rel (%p361) target = $region60
    $region59: #{_lambda_.2} parent=5 // pred_region
      %s365 = ssub.s32 %s16, 1
      %p366 = pneg %p37
      %p367 = pneg %p34
      %p368 = pneg %p58
      %p369 = pneg %p55
      %p370 = pneg %p79
      %p371 = pneg %p76
      %p372 = scmp.lt.s32.totalorder %s21, 1
      %s373 = scalar_select %p372, %s21, 1
      %s374 = scalar_lea.vmem %s3, %s373
      %p375 = pneg %p105
      %p376 = pneg %p102
      %p377 = scmp.lt.s32.totalorder %s21, 1
      %s378 = scalar_select %p377, %s21, 1
      %s379 = scalar_lea.vmem %s4, %s378
      %p380 = pneg %p131
      %p381 = pneg %p128
      %p382 = scmp.lt.s32.totalorder %s21, 1
      %s383 = scalar_select %p382, %s21, 1
      %s384 = smul.addr %s383, 112
      %s385 = smul.addr %s384, 4
      %s386 = scalar_lea.vmem %s5, %s385
      %p387 = pneg %p157
      %p388 = pneg %p154
      %p389 = scmp.lt.s32.totalorder %s21, 1
      %s390 = scalar_select %p389, %s21, 1
      %s391 = smul.addr %s390, 4
      %s392 = scalar_lea.vmem %s6, %s391
      %p393 = pneg %p183
      %p394 = pneg %p180
      %p395 = scmp.lt.s32.totalorder %s21, 1
      %s396 = scalar_select %p395, %s21, 1
      %s397 = smul.addr %s396, 16
      %s398 = smul.addr %s397, 4
      %s399 = scalar_lea.vmem %s7, %s398
      %p400 = pneg %p209
      %p401 = pneg %p206
      %p402 = scmp.lt.s32.totalorder %s21, 1
      %s403 = scalar_select %p402, %s21, 1
      %s404 = smul.addr %s403, 64
      %s405 = smul.addr %s404, 4
      %s406 = scalar_lea.vmem %s8, %s405
      %p407 = pneg %p235
      %p408 = pneg %p232
      %p409 = scmp.lt.s32.totalorder %s21, 1
      %s410 = scalar_select %p409, %s21, 1
      %s411 = scalar_lea.vmem %s9, %s410
      %p412 = pneg %p261
      %p413 = pneg %p258
      %p414 = pneg %p282
      %p415 = pneg %p279
      %p416 = scmp.lt.s32.totalorder %s21, 1
      %s417 = scalar_select %p416, %s21, 1
      %s418 = scalar_lea.vmem %s3, %s417
      %p419 = scmp.lt.s32.totalorder %s21, 1
      %s420 = scalar_select %p419, %s21, 1
      %s421 = scalar_lea.vmem %s4, %s420
      %p422 = scmp.lt.s32.totalorder %s21, 1
      %s423 = scalar_select %p422, %s21, 1
      %s424 = smul.addr %s423, 112
      %s425 = smul.addr %s424, 4
      %s426 = scalar_lea.vmem %s5, %s425
      %p427 = scmp.lt.s32.totalorder %s21, 1
      %s428 = scalar_select %p427, %s21, 1
      %s429 = smul.addr %s428, 4
      %s430 = scalar_lea.vmem %s6, %s429
      %p431 = scmp.lt.s32.totalorder %s21, 1
      %s432 = scalar_select %p431, %s21, 1
      %s433 = smul.addr %s432, 16
      %s434 = smul.addr %s433, 4
      %s435 = scalar_lea.vmem %s7, %s434
      %p436 = scmp.lt.s32.totalorder %s21, 1
      %s437 = scalar_select %p436, %s21, 1
      %s438 = smul.addr %s437, 64
      %s439 = smul.addr %s438, 4
      %s440 = scalar_lea.vmem %s8, %s439
      %p441 = scmp.lt.s32.totalorder %s21, 1
      %s442 = scalar_select %p441, %s21, 1
      %s443 = scalar_lea.vmem %s9, %s442
      %p445 = scmp.eq.s32.totalorder %s21, 0
      // Predicated region
      $region61: #{_lambda_.2} parent=59 // pred_check
        %p446 = pneg %p445
      $region62: #{_lambda_.2} parent=59 // pred_check_branch
        %448 = sbr.rel (%p446) target = $region64
      $region63: #{_lambda_.2} parent=59 // pred_region
        %v449 = vld [vmem:[%s0] sm:$0xff]
        %450 = vst [vmem:[%s10] sm:$0xff] %v449
      $region64: #{_lambda_.2} parent=59 // pred_fallthru
        _
      %v451 = vld [vmem:[%s10] sm:$0xff]
      %452 = vadd.xlane.f32.xlu0 %v451
      %v453 = vpop.xlane.xlu0 %452
      %v454 = vrcp.pop 128.0
      %v455 = vmul.f32 %v453, %v454
      %v456 = vsub.f32 %v451, %v455
      %v457 = vmul.f32 %v456, %v456
      %458 = vadd.xlane.f32.xlu0 %v457
      %v459 = vpop.xlane.xlu0 %458
      %v460 = vmul.f32 %v459, %v454
      %v461 = vadd.f32 %v460, 1e-05
      %v462 = vrsqrt.pop %v461
      %v463 = vmul.f32 %v456, %v462
      %v464 = vld [vmem:[%s418] sm:$0x1]
      %v466 = vlaneseq
      %v467 = vshrl.u32 %v466, 7
      %v468 = vsub.s32 0, %v467
      %v469 = vrot.slane %v464, %v468
      %v471 = vmul.f32 %v463, %v469
      %v472 = vld [vmem:[%s421] sm:$0x1]
      %v474 = vlaneseq
      %v475 = vshrl.u32 %v474, 7
      %v476 = vsub.s32 0, %v475
      %v477 = vrot.slane %v472, %v476
      %v479 = vadd.f32 %v471, %v477
      %v480 = vpack.c.bf16 %v479, %v479
      %v481 = vld [vmem:[%s426] sm:$0xff]
      %v482 = vld [vmem:[%s426 + $0x8] sm:$0xff]
      %v483 = vld [vmem:[%s426 + $0x10] sm:$0xff]
      %v484 = vld [vmem:[%s426 + $0x18] sm:$0xf]
      %v485 = vld [vmem:[%s426 + $0x1c] sm:$0xff]
      %v486 = vld [vmem:[%s426 + $0x24] sm:$0xff]
      %v487 = vld [vmem:[%s426 + $0x2c] sm:$0xff]
      %v488 = vld [vmem:[%s426 + $0x34] sm:$0xf]
      %v489 = vld [vmem:[%s426 + $0x38] sm:$0xff]
      %v490 = vld [vmem:[%s426 + $0x40] sm:$0xff]
      %v491 = vld [vmem:[%s426 + $0x48] sm:$0xff]
      %v492 = vld [vmem:[%s426 + $0x50] sm:$0xf]
      %v493 = vld [vmem:[%s426 + $0x54] sm:$0xff]
      %v494 = vld [vmem:[%s426 + $0x5c] sm:$0xff]
      %v495 = vld [vmem:[%s426 + $0x64] sm:$0xff]
      %v496 = vld [vmem:[%s426 + $0x6c] sm:$0xf]
      %v497 = vld [vmem:[%s426 + $0x70] sm:$0xff]
      %v498 = vld [vmem:[%s426 + $0x78] sm:$0xff]
      %v499 = vld [vmem:[%s426 + $0x80] sm:$0xff]
      %v500 = vld [vmem:[%s426 + $0x88] sm:$0xf]
      %v501 = vld [vmem:[%s426 + $0x8c] sm:$0xff]
      %v502 = vld [vmem:[%s426 + $0x94] sm:$0xff]
      %v503 = vld [vmem:[%s426 + $0x9c] sm:$0xff]
      %v504 = vld [vmem:[%s426 + $0xa4] sm:$0xf]
      %v505 = vld [vmem:[%s426 + $0xa8] sm:$0xff]
      %v506 = vld [vmem:[%s426 + $0xb0] sm:$0xff]
      %v507 = vld [vmem:[%s426 + $0xb8] sm:$0xff]
      %v508 = vld [vmem:[%s426 + $0xc0] sm:$0xf]
      %v509 = vld [vmem:[%s426 + $0xc4] sm:$0xff]
      %v510 = vld [vmem:[%s426 + $0xcc] sm:$0xff]
      %v511 = vld [vmem:[%s426 + $0xd4] sm:$0xff]
      %v512 = vld [vmem:[%s426 + $0xdc] sm:$0xf]
      %v513 = vld [vmem:[%s426 + $0xe0] sm:$0xff]
      %v514 = vld [vmem:[%s426 + $0xe8] sm:$0xff]
      %v515 = vld [vmem:[%s426 + $0xf0] sm:$0xff]
      %v516 = vld [vmem:[%s426 + $0xf8] sm:$0xf]
      %v517 = vld [vmem:[%s426 + $0xfc] sm:$0xff]
      %v518 = vld [vmem:[%s426 + $0x104] sm:$0xff]
      %v519 = vld [vmem:[%s426 + $0x10c] sm:$0xff]
      %v520 = vld [vmem:[%s426 + $0x114] sm:$0xf]
      %v521 = vld [vmem:[%s426 + $0x118] sm:$0xff]
      %v522 = vld [vmem:[%s426 + $0x120] sm:$0xff]
      %v523 = vld [vmem:[%s426 + $0x128] sm:$0xff]
      %v524 = vld [vmem:[%s426 + $0x130] sm:$0xf]
      %v525 = vld [vmem:[%s426 + $0x134] sm:$0xff]
      %v526 = vld [vmem:[%s426 + $0x13c] sm:$0xff]
      %v527 = vld [vmem:[%s426 + $0x144] sm:$0xff]
      %v528 = vld [vmem:[%s426 + $0x14c] sm:$0xf]
      %v529 = vld [vmem:[%s426 + $0x150] sm:$0xff]
      %v530 = vld [vmem:[%s426 + $0x158] sm:$0xff]
      %v531 = vld [vmem:[%s426 + $0x160] sm:$0xff]
      %v532 = vld [vmem:[%s426 + $0x168] sm:$0xf]
      %v533 = vld [vmem:[%s426 + $0x16c] sm:$0xff]
      %v534 = vld [vmem:[%s426 + $0x174] sm:$0xff]
      %v535 = vld [vmem:[%s426 + $0x17c] sm:$0xff]
      %v536 = vld [vmem:[%s426 + $0x184] sm:$0xf]
      %v537 = vld [vmem:[%s426 + $0x188] sm:$0xff]
      %v538 = vld [vmem:[%s426 + $0x190] sm:$0xff]
      %v539 = vld [vmem:[%s426 + $0x198] sm:$0xff]
      %v540 = vld [vmem:[%s426 + $0x1a0] sm:$0xf]
      %v541 = vld [vmem:[%s426 + $0x1a4] sm:$0xff]
      %v542 = vld [vmem:[%s426 + $0x1ac] sm:$0xff]
      %v543 = vld [vmem:[%s426 + $0x1b4] sm:$0xff]
      %v544 = vld [vmem:[%s426 + $0x1bc] sm:$0xf]
      %v609 = vunpack.c.l.b16 %v481
      %v610 = vunpack.c.h.b16 %v481
      %v611 = vunpack.c.l.b16 %v482
      %v612 = vunpack.c.h.b16 %v482
      %v613 = vunpack.c.l.b16 %v483
      %v614 = vunpack.c.h.b16 %v483
      %v615 = vunpack.c.l.b16 %v484
      %v616 = vunpack.c.l.b16 %v485
      %v617 = vunpack.c.h.b16 %v485
      %v618 = vunpack.c.l.b16 %v486
      %v619 = vunpack.c.h.b16 %v486
      %v620 = vunpack.c.l.b16 %v487
      %v621 = vunpack.c.h.b16 %v487
      %v622 = vunpack.c.l.b16 %v488
      %v623 = vunpack.c.l.b16 %v489
      %v624 = vunpack.c.h.b16 %v489
      %v625 = vunpack.c.l.b16 %v490
      %v626 = vunpack.c.h.b16 %v490
      %v627 = vunpack.c.l.b16 %v491
      %v628 = vunpack.c.h.b16 %v491
      %v629 = vunpack.c.l.b16 %v492
      %v630 = vunpack.c.l.b16 %v493
      %v631 = vunpack.c.h.b16 %v493
      %v632 = vunpack.c.l.b16 %v494
      %v633 = vunpack.c.h.b16 %v494
      %v634 = vunpack.c.l.b16 %v495
      %v635 = vunpack.c.h.b16 %v495
      %v636 = vunpack.c.l.b16 %v496
      %v637 = vunpack.c.l.b16 %v497
      %v638 = vunpack.c.h.b16 %v497
      %v639 = vunpack.c.l.b16 %v498
      %v640 = vunpack.c.h.b16 %v498
      %v641 = vunpack.c.l.b16 %v499
      %v642 = vunpack.c.h.b16 %v499
      %v643 = vunpack.c.l.b16 %v500
      %v644 = vunpack.c.l.b16 %v501
      %v645 = vunpack.c.h.b16 %v501
      %v646 = vunpack.c.l.b16 %v502
      %v647 = vunpack.c.h.b16 %v502
      %v648 = vunpack.c.l.b16 %v503
      %v649 = vunpack.c.h.b16 %v503
      %v650 = vunpack.c.l.b16 %v504
      %v651 = vunpack.c.l.b16 %v505
      %v652 = vunpack.c.h.b16 %v505
      %v653 = vunpack.c.l.b16 %v506
      %v654 = vunpack.c.h.b16 %v506
      %v655 = vunpack.c.l.b16 %v507
      %v656 = vunpack.c.h.b16 %v507
      %v657 = vunpack.c.l.b16 %v508
      %v658 = vunpack.c.l.b16 %v509
      %v659 = vunpack.c.h.b16 %v509
      %v660 = vunpack.c.l.b16 %v510
      %v661 = vunpack.c.h.b16 %v510
      %v662 = vunpack.c.l.b16 %v511
      %v663 = vunpack.c.h.b16 %v511
      %v664 = vunpack.c.l.b16 %v512
      %v665 = vunpack.c.l.b16 %v513
      %v666 = vunpack.c.h.b16 %v513
      %v667 = vunpack.c.l.b16 %v514
      %v668 = vunpack.c.h.b16 %v514
      %v669 = vunpack.c.l.b16 %v515
      %v670 = vunpack.c.h.b16 %v515
      %v671 = vunpack.c.l.b16 %v516
      %v672 = vunpack.c.l.b16 %v517
      %v673 = vunpack.c.h.b16 %v517
      %v674 = vunpack.c.l.b16 %v518
      %v675 = vunpack.c.h.b16 %v518
      %v676 = vunpack.c.l.b16 %v519
      %v677 = vunpack.c.h.b16 %v519
      %v678 = vunpack.c.l.b16 %v520
      %v679 = vunpack.c.l.b16 %v521
      %v680 = vunpack.c.h.b16 %v521
      %v681 = vunpack.c.l.b16 %v522
      %v682 = vunpack.c.h.b16 %v522
      %v683 = vunpack.c.l.b16 %v523
      %v684 = vunpack.c.h.b16 %v523
      %v685 = vunpack.c.l.b16 %v524
      %v686 = vunpack.c.l.b16 %v525
      %v687 = vunpack.c.h.b16 %v525
      %v688 = vunpack.c.l.b16 %v526
      %v689 = vunpack.c.h.b16 %v526
      %v690 = vunpack.c.l.b16 %v527
      %v691 = vunpack.c.h.b16 %v527
      %v692 = vunpack.c.l.b16 %v528
      %v693 = vunpack.c.l.b16 %v529
      %v694 = vunpack.c.h.b16 %v529
      %v695 = vunpack.c.l.b16 %v530
      %v696 = vunpack.c.h.b16 %v530
      %v697 = vunpack.c.l.b16 %v531
      %v698 = vunpack.c.h.b16 %v531
      %v699 = vunpack.c.l.b16 %v532
      %v700 = vunpack.c.l.b16 %v533
      %v701 = vunpack.c.h.b16 %v533
      %v702 = vunpack.c.l.b16 %v534
      %v703 = vunpack.c.h.b16 %v534
      %v704 = vunpack.c.l.b16 %v535
      %v705 = vunpack.c.h.b16 %v535
      %v706 = vunpack.c.l.b16 %v536
      %v707 = vunpack.c.l.b16 %v537
      %v708 = vunpack.c.h.b16 %v537
      %v709 = vunpack.c.l.b16 %v538
      %v710 = vunpack.c.h.b16 %v538
      %v711 = vunpack.c.l.b16 %v539
      %v712 = vunpack.c.h.b16 %v539
      %v713 = vunpack.c.l.b16 %v540
      %v714 = vunpack.c.l.b16 %v541
      %v715 = vunpack.c.h.b16 %v541
      %v716 = vunpack.c.l.b16 %v542
      %v717 = vunpack.c.h.b16 %v542
      %v718 = vunpack.c.l.b16 %v543
      %v719 = vunpack.c.h.b16 %v543
      %v720 = vunpack.c.l.b16 %v544
      %v721 = vpack.c.b16 %v616, %v609
      %v722 = vpack.c.b16 %v617, %v610
      %v723 = vpack.c.b16 %v618, %v611
      %v724 = vpack.c.b16 %v619, %v612
      %v725 = vpack.c.b16 %v620, %v613
      %v726 = vpack.c.b16 %v621, %v614
      %v727 = vpack.c.b16 %v622, %v615
      %v728 = vpack.c.b16 %v630, %v623
      %v729 = vpack.c.b16 %v631, %v624
      %v730 = vpack.c.b16 %v632, %v625
      %v731 = vpack.c.b16 %v633, %v626
      %v732 = vpack.c.b16 %v634, %v627
      %v733 = vpack.c.b16 %v635, %v628
      %v734 = vpack.c.b16 %v636, %v629
      %v735 = vpack.c.b16 %v644, %v637
      %v736 = vpack.c.b16 %v645, %v638
      %v737 = vpack.c.b16 %v646, %v639
      %v738 = vpack.c.b16 %v647, %v640
      %v739 = vpack.c.b16 %v648, %v641
      %v740 = vpack.c.b16 %v649, %v642
      %v741 = vpack.c.b16 %v650, %v643
      %v742 = vpack.c.b16 %v658, %v651
      %v743 = vpack.c.b16 %v659, %v652
      %v744 = vpack.c.b16 %v660, %v653
      %v745 = vpack.c.b16 %v661, %v654
      %v746 = vpack.c.b16 %v662, %v655
      %v747 = vpack.c.b16 %v663, %v656
      %v748 = vpack.c.b16 %v664, %v657
      %v749 = vpack.c.b16 %v672, %v665
      %v750 = vpack.c.b16 %v673, %v666
      %v751 = vpack.c.b16 %v674, %v667
      %v752 = vpack.c.b16 %v675, %v668
      %v753 = vpack.c.b16 %v676, %v669
      %v754 = vpack.c.b16 %v677, %v670
      %v755 = vpack.c.b16 %v678, %v671
      %v756 = vpack.c.b16 %v686, %v679
      %v757 = vpack.c.b16 %v687, %v680
      %v758 = vpack.c.b16 %v688, %v681
      %v759 = vpack.c.b16 %v689, %v682
      %v760 = vpack.c.b16 %v690, %v683
      %v761 = vpack.c.b16 %v691, %v684
      %v762 = vpack.c.b16 %v692, %v685
      %v763 = vpack.c.b16 %v700, %v693
      %v764 = vpack.c.b16 %v701, %v694
      %v765 = vpack.c.b16 %v702, %v695
      %v766 = vpack.c.b16 %v703, %v696
      %v767 = vpack.c.b16 %v704, %v697
      %v768 = vpack.c.b16 %v705, %v698
      %v769 = vpack.c.b16 %v706, %v699
      %v770 = vpack.c.b16 %v714, %v707
      %v771 = vpack.c.b16 %v715, %v708
      %v772 = vpack.c.b16 %v716, %v709
      %v773 = vpack.c.b16 %v717, %v710
      %v774 = vpack.c.b16 %v718, %v711
      %v775 = vpack.c.b16 %v719, %v712
      %v776 = vpack.c.b16 %v720, %v713
      %833 = vmatprep.subr.bf16.mxu0 %v722
      %834 = vmatpush1.bf16.msra.mxu0 %v721
      %835 = vmatprep.subr.bf16.mxu0 %v729
      %836 = vmatpush1.bf16.msra.mxu0 %v728
      %837 = vmatprep.subr.bf16.mxu0 %v736
      %838 = vmatpush1.bf16.msra.mxu0 %v735
      %839 = vmatprep.subr.bf16.mxu0 %v743
      %840 = vmatpush1.bf16.msra.mxu0 %v742
      %841 = vmatprep.subr.bf16.mxu0 %v750
      %842 = vmatpush1.bf16.msra.mxu0 %v749
      %843 = vmatprep.subr.bf16.mxu0 %v757
      %844 = vmatpush1.bf16.msra.mxu0 %v756
      %845 = vmatprep.subr.bf16.mxu0 %v764
      %846 = vmatpush1.bf16.msra.mxu0 %v763
      %847 = vmatprep.subr.bf16.mxu0 %v771
      %848 = vmatpush1.bf16.msra.mxu0 %v770
      %849 = vmatprep.subr.bf16.mxu0 0
      %850 = vmatpush1.bf16.msra.mxu0 0
      %851 = vmatprep.subr.bf16.mxu0 0
      %852 = vmatpush1.bf16.msra.mxu0 0
      %853 = vmatprep.subr.bf16.mxu0 0
      %854 = vmatpush1.bf16.msra.mxu0 0
      %855 = vmatprep.subr.bf16.mxu0 0
      %856 = vmatpush1.bf16.msra.mxu0 0
      %857 = vmatprep.subr.bf16.mxu0 0
      %858 = vmatpush1.bf16.msra.mxu0 0
      %859 = vmatprep.subr.bf16.mxu0 0
      %860 = vmatpush1.bf16.msra.mxu0 0
      %861 = vmatprep.subr.bf16.mxu0 0
      %862 = vmatpush1.bf16.msra.mxu0 0
      %863 = vmatprep.subr.bf16.mxu0 0
      %864 = vmatpush1.bf16.msra.mxu0 0
      %865 = vmatprep.mubr.bf16.mxu0 0
      %866 = vmatmul.mubr.bf16.gmra.mrb[0].mxu0 %v480
      %v867 = vpop.f32.mrb[0].mxu0
      %v868 = vadd.f32 0.0, %v867
      %v869 = vpop.f32.mrb[0].mxu0
      %v870 = vadd.f32 0.0, %v869
      %v871 = vpop.f32.mrb[0].mxu0
      %v872 = vpop.f32.mrb[0].mxu0
      %873 = vdwg.mxu0
      %874 = vmatprep.subr.bf16.mxu0 %v724
      %875 = vmatpush1.bf16.msra.mxu0 %v723
      %876 = vmatprep.subr.bf16.mxu0 %v731
      %877 = vmatpush1.bf16.msra.mxu0 %v730
      %878 = vmatprep.subr.bf16.mxu0 %v738
      %879 = vmatpush1.bf16.msra.mxu0 %v737
      %880 = vmatprep.subr.bf16.mxu0 %v745
      %881 = vmatpush1.bf16.msra.mxu0 %v744
      %882 = vmatprep.subr.bf16.mxu0 %v752
      %883 = vmatpush1.bf16.msra.mxu0 %v751
      %884 = vmatprep.subr.bf16.mxu0 %v759
      %885 = vmatpush1.bf16.msra.mxu0 %v758
      %886 = vmatprep.subr.bf16.mxu0 %v766
      %887 = vmatpush1.bf16.msra.mxu0 %v765
      %888 = vmatprep.subr.bf16.mxu0 %v773
      %889 = vmatpush1.bf16.msra.mxu0 %v772
      %890 = vmatprep.subr.bf16.mxu0 0
      %891 = vmatpush1.bf16.msra.mxu0 0
      %892 = vmatprep.subr.bf16.mxu0 0
      %893 = vmatpush1.bf16.msra.mxu0 0
      %894 = vmatprep.subr.bf16.mxu0 0
      %895 = vmatpush1.bf16.msra.mxu0 0
      %896 = vmatprep.subr.bf16.mxu0 0
      %897 = vmatpush1.bf16.msra.mxu0 0
      %898 = vmatprep.subr.bf16.mxu0 0
      %899 = vmatpush1.bf16.msra.mxu0 0
      %900 = vmatprep.subr.bf16.mxu0 0
      %901 = vmatpush1.bf16.msra.mxu0 0
      %902 = vmatprep.subr.bf16.mxu0 0
      %903 = vmatpush1.bf16.msra.mxu0 0
      %904 = vmatprep.subr.bf16.mxu0 0
      %905 = vmatpush1.bf16.msra.mxu0 0
      %906 = vmatprep.mubr.bf16.mxu0 0
      %907 = vmatmul.mubr.bf16.gmra.mrb[0].mxu0 %v480
      %v908 = vpop.f32.mrb[0].mxu0
      %v909 = vadd.f32 0.0, %v908
      %v910 = vpop.f32.mrb[0].mxu0
      %v911 = vadd.f32 0.0, %v910
      %v912 = vpop.f32.mrb[0].mxu0
      %v913 = vpop.f32.mrb[0].mxu0
      %914 = vdwg.mxu0
      %915 = vmatprep.subr.bf16.mxu0 %v726
      %916 = vmatpush1.bf16.msra.mxu0 %v725
      %917 = vmatprep.subr.bf16.mxu0 %v733
      %918 = vmatpush1.bf16.msra.mxu0 %v732
      %919 = vmatprep.subr.bf16.mxu0 %v740
      %920 = vmatpush1.bf16.msra.mxu0 %v739
      %921 = vmatprep.subr.bf16.mxu0 %v747
      %922 = vmatpush1.bf16.msra.mxu0 %v746
      %923 = vmatprep.subr.bf16.mxu0 %v754
      %924 = vmatpush1.bf16.msra.mxu0 %v753
      %925 = vmatprep.subr.bf16.mxu0 %v761
      %926 = vmatpush1.bf16.msra.mxu0 %v760
      %927 = vmatprep.subr.bf16.mxu0 %v768
      %928 = vmatpush1.bf16.msra.mxu0 %v767
      %929 = vmatprep.subr.bf16.mxu0 %v775
      %930 = vmatpush1.bf16.msra.mxu0 %v774
      %931 = vmatprep.subr.bf16.mxu0 0
      %932 = vmatpush1.bf16.msra.mxu0 0
      %933 = vmatprep.subr.bf16.mxu0 0
      %934 = vmatpush1.bf16.msra.mxu0 0
      %935 = vmatprep.subr.bf16.mxu0 0
      %936 = vmatpush1.bf16.msra.mxu0 0
      %937 = vmatprep.subr.bf16.mxu0 0
      %938 = vmatpush1.bf16.msra.mxu0 0
      %939 = vmatprep.subr.bf16.mxu0 0
      %940 = vmatpush1.bf16.msra.mxu0 0
      %941 = vmatprep.subr.bf16.mxu0 0
      %942 = vmatpush1.bf16.msra.mxu0 0
      %943 = vmatprep.subr.bf16.mxu0 0
      %944 = vmatpush1.bf16.msra.mxu0 0
      %945 = vmatprep.subr.bf16.mxu0 0
      %946 = vmatpush1.bf16.msra.mxu0 0
      %947 = vmatprep.mubr.bf16.mxu0 0
      %948 = vmatmul.mubr.bf16.gmra.mrb[0].mxu0 %v480
      %v949 = vpop.f32.mrb[0].mxu0
      %v950 = vadd.f32 0.0, %v949
      %v951 = vpop.f32.mrb[0].mxu0
      %v952 = vadd.f32 0.0, %v951
      %v953 = vpop.f32.mrb[0].mxu0
      %v954 = vpop.f32.mrb[0].mxu0
      %955 = vdwg.mxu0
      %956 = vmatprep.subr.bf16.mxu0 0
      %957 = vmatpush1.bf16.msra.mxu0 %v727
      %958 = vmatprep.subr.bf16.mxu0 0
      %959 = vmatpush1.bf16.msra.mxu0 %v734
      %960 = vmatprep.subr.bf16.mxu0 0
      %961 = vmatpush1.bf16.msra.mxu0 %v741
      %962 = vmatprep.subr.bf16.mxu0 0
      %963 = vmatpush1.bf16.msra.mxu0 %v748
      %964 = vmatprep.subr.bf16.mxu0 0
      %965 = vmatpush1.bf16.msra.mxu0 %v755
      %966 = vmatprep.subr.bf16.mxu0 0
      %967 = vmatpush1.bf16.msra.mxu0 %v762
      %968 = vmatprep.subr.bf16.mxu0 0
      %969 = vmatpush1.bf16.msra.mxu0 %v769
      %970 = vmatprep.subr.bf16.mxu0 0
      %971 = vmatpush1.bf16.msra.mxu0 %v776
      %972 = vmatprep.subr.bf16.mxu0 0
      %973 = vmatpush1.bf16.msra.mxu0 0
      %974 = vmatprep.subr.bf16.mxu0 0
      %975 = vmatpush1.bf16.msra.mxu0 0
      %976 = vmatprep.subr.bf16.mxu0 0
      %977 = vmatpush1.bf16.msra.mxu0 0
      %978 = vmatprep.subr.bf16.mxu0 0
      %979 = vmatpush1.bf16.msra.mxu0 0
      %980 = vmatprep.subr.bf16.mxu0 0
      %981 = vmatpush1.bf16.msra.mxu0 0
      %982 = vmatprep.subr.bf16.mxu0 0
      %983 = vmatpush1.bf16.msra.mxu0 0
      %984 = vmatprep.subr.bf16.mxu0 0
      %985 = vmatpush1.bf16.msra.mxu0 0
      %986 = vmatprep.subr.bf16.mxu0 0
      %987 = vmatpush1.bf16.msra.mxu0 0
      %988 = vmatprep.mubr.bf16.mxu0 0
      %989 = vmatmul.mubr.bf16.gmra.mrb[0].mxu0 %v480
      %v990 = vpop.f32.mrb[0].mxu0
      %v991 = vadd.f32 0.0, %v990
      %v992 = vpop.f32.mrb[0].mxu0
      %v993 = vpop.f32.mrb[0].mxu0
      %v994 = vpop.f32.mrb[0].mxu0
      %995 = vdwg.mxu0
      %v996 = vld [vmem:[%s430] sm:$0xf]
      %v998 = vlaneseq
      %v999 = vshrl.u32 %v998, 7
      %v1000 = vsub.s32 0, %v999
      %v1001 = vrot.slane %v996, %v1000
      %v1002 = vlaneseq
      %v1003 = vshrl.u32 %v1002, 7
      %v1004 = vsub.s32 1, %v1003
      %v1005 = vrot.slane %v996, %v1004
      %v1006 = vlaneseq
      %v1007 = vshrl.u32 %v1006, 7
      %v1008 = vsub.s32 2, %v1007
      %v1009 = vrot.slane %v996, %v1008
      %v1010 = vlaneseq
      %v1011 = vshrl.u32 %v1010, 7
      %v1012 = vsub.s32 3, %v1011
      %v1013 = vrot.slane %v996, %v1012
      %v1018 = vadd.f32 %v868, %v1001
      %v1019 = vadd.f32 %v870, %v1005
      %v1020 = vadd.f32 %v909, %v1009
      %v1021 = vadd.f32 %v911, %v1013
      %v1022 = vmul.f32 %v1018, 0.5
      %v1023 = vmul.f32 %v1019, 0.5
      %v1024 = vmul.f32 %v1020, 0.5
      %v1025 = vmul.f32 %v1021, 0.5
      %v1026 = vmul.f32 %v1018, 0.044715
      %v1027 = vmul.f32 %v1019, 0.044715
      %v1028 = vmul.f32 %v1020, 0.044715
      %v1029 = vmul.f32 %v1021, 0.044715
      %v1030 = vmul.f32 %v1026, %v1018
      %v1031 = vmul.f32 %v1027, %v1019
      %v1032 = vmul.f32 %v1028, %v1020
      %v1033 = vmul.f32 %v1029, %v1021
      %v1034 = vmul.f32 %v1030, %v1018
      %v1035 = vmul.f32 %v1031, %v1019
      %v1036 = vmul.f32 %v1032, %v1020
      %v1037 = vmul.f32 %v1033, %v1021
      %v1038 = vadd.f32 %v1018, %v1034
      %v1039 = vadd.f32 %v1019, %v1035
      %v1040 = vadd.f32 %v1020, %v1036
      %v1041 = vadd.f32 %v1021, %v1037
      %v1042 = vmul.f32 %v1038, 0.7978846
      %v1043 = vmul.f32 %v1039, 0.7978846
      %v1044 = vmul.f32 %v1040, 0.7978846
      %v1045 = vmul.f32 %v1041, 0.7978846
      %v1046 = vtanh.pop %v1042
      %v1047 = vtanh.pop %v1043
      %v1048 = vtanh.pop %v1044
      %v1049 = vtanh.pop %v1045
      %v1050 = vadd.f32 %v1046, 1.0
      %v1051 = vadd.f32 %v1047, 1.0
      %v1052 = vadd.f32 %v1048, 1.0
      %v1053 = vadd.f32 %v1049, 1.0
      %v1054 = vmul.f32 %v1022, %v1050
      %v1055 = vmul.f32 %v1023, %v1051
      %v1056 = vmul.f32 %v1024, %v1052
      %v1057 = vmul.f32 %v1025, %v1053
      %v1058 = vld [vmem:[%s1] sm:$0xff]
      %1060 = vrot.lane.b32.xlu0 %v1058, 32
      %v1061 = vpop.permute.xlu0 %1060
      %1063 = vrot.lane.b32.xlu0 %v1058, 64
      %v1064 = vpop.permute.xlu0 %1063
      %1066 = vrot.lane.b32.xlu0 %v1058, 96
      %v1067 = vpop.permute.xlu0 %1066
      %vm1069 = vcmask 261120
      %v1070 = vsel %vm1069, %v1058, %v1061
      %vm1071 = vcmask 523264
      %v1072 = vsel %vm1071, %v1070, %v1064
      %vm1073 = vcmask 785408
      %v1074 = vsel %vm1073, %v1072, %v1067
      %v1075 = vld [vmem:[%s2] sm:$0xff]
      %1077 = vrot.lane.b32.xlu0 %v1075, 32
      %v1078 = vpop.permute.xlu0 %1077
      %1080 = vrot.lane.b32.xlu0 %v1075, 64
      %v1081 = vpop.permute.xlu0 %1080
      %1083 = vrot.lane.b32.xlu0 %v1075, 96
      %v1084 = vpop.permute.xlu0 %1083
      %v1086 = vsel %vm1069, %v1075, %v1078
      %v1087 = vsel %vm1071, %v1086, %v1081
      %v1088 = vsel %vm1073, %v1087, %v1084
      %v1089 = vlaneseq
      %v1090 = vand.u32 %v1089, 127
      %vm1091 = vcmp.lt.s32.totalorder %v1090, 0
      %v1092 = vsub.s32 0, %v1090
      %v1093 = vsel %vm1091, %v1092, %v1090
      %v1094 = vshrl.u32 %v1093, 1
      %v1095 = vand.u32 %v1093, 1
      %v1096 = vsub.s32 0, %v1095
      %v1097 = vsel %vm1091, %v1096, %v1095
      %vm1098 = vcmp.ne.s32.totalorder %v1097, 0
      %vm1099 = vcmp.lt.s32.totalorder %v1097, 0
      %vm1100 = vmand %vm1099, %vm1098
      %v1101 = vadd.s32 %v1097, 2
      %v1102 = vsel %vm1100, %v1101, %v1097
      %vm1103 = vcmp.eq.s32.totalorder %v1102, 0
      %v1104 = vmul.f32 %v950, %v1074
      %1105 = vrot.lane.b32.xlu0 %v950, 127
      %v1106 = vpop.permute.xlu0 %1105
      %1107 = vrot.lane.b32.xlu0 %v950, 1
      %v1108 = vpop.permute.xlu0 %1107
      %v1109 = vsel %vm1103, %v1106, %v1108
      %v1110 = vmul.f32 %v1109, %v1088
      %v1111 = vadd.f32 %v1104, %v1110
      %v1112 = vmul.f32 %v952, %v1074
      %1113 = vrot.lane.b32.xlu0 %v952, 127
      %v1114 = vpop.permute.xlu0 %1113
      %1115 = vrot.lane.b32.xlu0 %v952, 1
      %v1116 = vpop.permute.xlu0 %1115
      %v1117 = vsel %vm1103, %v1114, %v1116
      %v1118 = vmul.f32 %v1117, %v1088
      %v1119 = vadd.f32 %v1112, %v1118
      %v1120 = vlaneseq
      %v1121 = vshrl.u32 %v1120, 7
      %vm1122 = vcmp.le.s32.totalorder %v1090, %v1121
      %v1123 = vld [vmem:[%s435] sm:$0xf]
      %v1124 = vld [vmem:[%s435 + $0x4] sm:$0xf]
      %v1125 = vld [vmem:[%s435 + $0x8] sm:$0xf]
      %v1126 = vld [vmem:[%s435 + $0xc] sm:$0xf]
      %v1127 = vld [vmem:[%s435 + $0x10] sm:$0xf]
      %v1128 = vld [vmem:[%s435 + $0x14] sm:$0xf]
      %v1129 = vld [vmem:[%s435 + $0x18] sm:$0xf]
      %v1130 = vld [vmem:[%s435 + $0x1c] sm:$0xf]
      %v1131 = vld [vmem:[%s435 + $0x20] sm:$0xf]
      %v1132 = vld [vmem:[%s435 + $0x24] sm:$0xf]
      %v1133 = vld [vmem:[%s435 + $0x28] sm:$0xf]
      %v1134 = vld [vmem:[%s435 + $0x2c] sm:$0xf]
      %v1135 = vld [vmem:[%s435 + $0x30] sm:$0xf]
      %v1136 = vld [vmem:[%s435 + $0x34] sm:$0xf]
      %v1137 = vld [vmem:[%s435 + $0x38] sm:$0xf]
      %v1138 = vld [vmem:[%s435 + $0x3c] sm:$0xf]
      %v1139 = vpack.c.bf16 %v1111, %v1111
      %v1140 = vpack.c.bf16 %v1119, %v1119
      %v1141 = vpack.c.bf16 %v991, %v991
      %v1143 = vsel %vm1069, %v1139, 0
      %v1146 = vsel %vm1069, %v1140, 0
      %1148 = vmatprep.subr.bf16.mxu0 0
      %1149 = vmatpush1.bf16.xpose.msra.mxu0 %v1146
      %1150 = vmatprep.subr.bf16.mxu0 0
      %1151 = vmatpush1.bf16.xpose.msra.mxu0 0
      %1152 = vmatprep.subr.bf16.mxu0 0
      %1153 = vmatpush1.bf16.xpose.msra.mxu0 0
      %1154 = vmatprep.subr.bf16.mxu0 0
      %1155 = vmatpush1.bf16.xpose.msra.mxu0 0
      %1156 = vmatprep.subr.bf16.mxu0 0
      %1157 = vmatpush1.bf16.xpose.msra.mxu0 0
      %1158 = vmatprep.subr.bf16.mxu0 0
      %1159 = vmatpush1.bf16.xpose.msra.mxu0 0
      %1160 = vmatprep.subr.bf16.mxu0 0
      %1161 = vmatpush1.bf16.xpose.msra.mxu0 0
      %1162 = vmatprep.subr.bf16.mxu0 0
      %1163 = vmatpush1.bf16.xpose.msra.mxu0 0
      %1164 = vmatprep.subr.bf16.mxu0 0
      %1165 = vmatpush1.bf16.xpose.msra.mxu0 0
      %1166 = vmatprep.subr.bf16.mxu0 0
      %1167 = vmatpush1.bf16.xpose.msra.mxu0 0
      %1168 = vmatprep.subr.bf16.mxu0 0
      %1169 = vmatpush1.bf16.xpose.msra.mxu0 0
      %1170 = vmatprep.subr.bf16.mxu0 0
      %1171 = vmatpush1.bf16.xpose.msra.mxu0 0
      %1172 = vmatprep.subr.bf16.mxu0 0
      %1173 = vmatpush1.bf16.xpose.msra.mxu0 0
      %1174 = vmatprep.subr.bf16.mxu0 0
      %1175 = vmatpush1.bf16.xpose.msra.mxu0 0
      %1176 = vmatprep.subr.bf16.mxu0 0
      %1177 = vmatpush1.bf16.xpose.msra.mxu0 0
      %1178 = vmatprep.subr.bf16.mxu0 0
      %1179 = vmatpush1.bf16.xpose.msra.mxu0 0
      %1180 = vmatprep.mubr.bf16.mxu0 0
      %1181 = vmatmul.mubr.bf16.gmra.mrb[0].mxu0 %v1143
      %v1182 = vpop.f32.mrb[0].mxu0
      %v1183 = vadd.f32 0.0, %v1182
      %v1184 = vpop.f32.mrb[0].mxu0
      %v1185 = vpop.f32.mrb[0].mxu0
      %v1186 = vpop.f32.mrb[0].mxu0
      %1187 = vdwg.mxu0
      %v1188 = vsel %vm1122, %v1183, -1e+30
      %vm1189 = vcmask 64512
      %v1190 = vsel %vm1189, %v1188, -inf
      %1191 = vmax.xlane.f32.xlu0 %v1190
      %v1192 = vpop.xlane.xlu0 %1191
      %v1193 = vsub.f32 %v1188, %v1192
      %v1194 = vmul.f32 %v1193, 1.442695
      %v1195 = vpow.pop %v1194
      %v1196 = vsel %vm1189, %v1195, 0.0
      %1197 = vadd.xlane.f32.xlu0 %v1196
      %v1198 = vpop.xlane.xlu0 %1197
      %v1199 = vpack.c.bf16 %v1195, %v1195
      %v1201 = vsel %vm1189, %v1199, 0
      %vm1203 = vcmask 1043456
      %v1205 = vsel %vm1203, %v1141, 0
      %1207 = vmatprep.subr.bf16.mxu0 0
      %1208 = vmatpush1.bf16.msra.mxu0 %v1205
      %1209 = vmatprep.subr.bf16.mxu0 0
      %1210 = vmatpush1.bf16.msra.mxu0 0
      %1211 = vmatprep.subr.bf16.mxu0 0
      %1212 = vmatpush1.bf16.msra.mxu0 0
      %1213 = vmatprep.subr.bf16.mxu0 0
      %1214 = vmatpush1.bf16.msra.mxu0 0
      %1215 = vmatprep.subr.bf16.mxu0 0
      %1216 = vmatpush1.bf16.msra.mxu0 0
      %1217 = vmatprep.subr.bf16.mxu0 0
      %1218 = vmatpush1.bf16.msra.mxu0 0
      %1219 = vmatprep.subr.bf16.mxu0 0
      %1220 = vmatpush1.bf16.msra.mxu0 0
      %1221 = vmatprep.subr.bf16.mxu0 0
      %1222 = vmatpush1.bf16.msra.mxu0 0
      %1223 = vmatprep.subr.bf16.mxu0 0
      %1224 = vmatpush1.bf16.msra.mxu0 0
      %1225 = vmatprep.subr.bf16.mxu0 0
      %1226 = vmatpush1.bf16.msra.mxu0 0
      %1227 = vmatprep.subr.bf16.mxu0 0
      %1228 = vmatpush1.bf16.msra.mxu0 0
      %1229 = vmatprep.subr.bf16.mxu0 0
      %1230 = vmatpush1.bf16.msra.mxu0 0
      %1231 = vmatprep.subr.bf16.mxu0 0
      %1232 = vmatpush1.bf16.msra.mxu0 0
      %1233 = vmatprep.subr.bf16.mxu0 0
      %1234 = vmatpush1.bf16.msra.mxu0 0
      %1235 = vmatprep.subr.bf16.mxu0 0
      %1236 = vmatpush1.bf16.msra.mxu0 0
      %1237 = vmatprep.subr.bf16.mxu0 0
      %1238 = vmatpush1.bf16.msra.mxu0 0
      %1239 = vmatprep.mubr.bf16.mxu0 0
      %1240 = vmatmul.mubr.bf16.gmra.mrb[0].mxu0 %v1201
      %v1241 = vpop.f32.mrb[0].mxu0
      %v1242 = vadd.f32 0.0, %v1241
      %v1243 = vpop.f32.mrb[0].mxu0
      %v1244 = vpop.f32.mrb[0].mxu0
      %v1245 = vpop.f32.mrb[0].mxu0
      %1246 = vdwg.mxu0
      %v1247 = vrcp.pop %v1198
      %v1248 = vmul.f32 %v1242, %v1247
      %v1249 = vpack.c.bf16 %v1248, %v1248
      %1251 = vrot.lane.b32.xlu0 %v1139, 96
      %v1252 = vpop.permute.xlu0 %1251
      %1254 = vrot.lane.b32.xlu0 %v1140, 96
      %v1255 = vpop.permute.xlu0 %1254
      %v1257 = vsel %vm1069, %v1252, 0
      %v1260 = vsel %vm1069, %v1255, 0
      %1262 = vmatprep.subr.bf16.mxu0 0
      %1263 = vmatpush1.bf16.xpose.msra.mxu0 %v1260
      %1264 = vmatprep.subr.bf16.mxu0 0
      %1265 = vmatpush1.bf16.xpose.msra.mxu0 0
      %1266 = vmatprep.subr.bf16.mxu0 0
      %1267 = vmatpush1.bf16.xpose.msra.mxu0 0
      %1268 = vmatprep.subr.bf16.mxu0 0
      %1269 = vmatpush1.bf16.xpose.msra.mxu0 0
      %1270 = vmatprep.subr.bf16.mxu0 0
      %1271 = vmatpush1.bf16.xpose.msra.mxu0 0
      %1272 = vmatprep.subr.bf16.mxu0 0
      %1273 = vmatpush1.bf16.xpose.msra.mxu0 0
      %1274 = vmatprep.subr.bf16.mxu0 0
      %1275 = vmatpush1.bf16.xpose.msra.mxu0 0
      %1276 = vmatprep.subr.bf16.mxu0 0
      %1277 = vmatpush1.bf16.xpose.msra.mxu0 0
      %1278 = vmatprep.subr.bf16.mxu0 0
      %1279 = vmatpush1.bf16.xpose.msra.mxu0 0
      %1280 = vmatprep.subr.bf16.mxu0 0
      %1281 = vmatpush1.bf16.xpose.msra.mxu0 0
      %1282 = vmatprep.subr.bf16.mxu0 0
      %1283 = vmatpush1.bf16.xpose.msra.mxu0 0
      %1284 = vmatprep.subr.bf16.mxu0 0
      %1285 = vmatpush1.bf16.xpose.msra.mxu0 0
      %1286 = vmatprep.subr.bf16.mxu0 0
      %1287 = vmatpush1.bf16.xpose.msra.mxu0 0
      %1288 = vmatprep.subr.bf16.mxu0 0
      %1289 = vmatpush1.bf16.xpose.msra.mxu0 0
      %1290 = vmatprep.subr.bf16.mxu0 0
      %1291 = vmatpush1.bf16.xpose.msra.mxu0 0
      %1292 = vmatprep.subr.bf16.mxu0 0
      %1293 = vmatpush1.bf16.xpose.msra.mxu0 0
      %1294 = vmatprep.mubr.bf16.mxu0 0
      %1295 = vmatmul.mubr.bf16.gmra.mrb[0].mxu0 %v1257
      %v1296 = vpop.f32.mrb[0].mxu0
      %v1297 = vadd.f32 0.0, %v1296
      %v1298 = vpop.f32.mrb[0].mxu0
      %v1299 = vpop.f32.mrb[0].mxu0
      %v1300 = vpop.f32.mrb[0].mxu0
      %1301 = vdwg.mxu0
      %v1302 = vsel %vm1122, %v1297, -1e+30
      %v1303 = vsel %vm1189, %v1302, -inf
      %1304 = vmax.xlane.f32.xlu0 %v1303
      %v1305 = vpop.xlane.xlu0 %1304
      %v1306 = vsub.f32 %v1302, %v1305
      %v1307 = vmul.f32 %v1306, 1.442695
      %v1308 = vpow.pop %v1307
      %v1309 = vsel %vm1189, %v1308, 0.0
      %1310 = vadd.xlane.f32.xlu0 %v1309
      %v1311 = vpop.xlane.xlu0 %1310
      %v1312 = vpack.c.bf16 %v1308, %v1308
      %1314 = vrot.lane.b32.xlu0 %v1141, 96
      %v1315 = vpop.permute.xlu0 %1314
      %v1317 = vsel %vm1189, %v1312, 0
      %v1320 = vsel %vm1203, %v1315, 0
      %1322 = vmatprep.subr.bf16.mxu0 0
      %1323 = vmatpush1.bf16.msra.mxu0 %v1320
      %1324 = vmatprep.subr.bf16.mxu0 0
      %1325 = vmatpush1.bf16.msra.mxu0 0
      %1326 = vmatprep.subr.bf16.mxu0 0
      %1327 = vmatpush1.bf16.msra.mxu0 0
      %1328 = vmatprep.subr.bf16.mxu0 0
      %1329 = vmatpush1.bf16.msra.mxu0 0
      %1330 = vmatprep.subr.bf16.mxu0 0
      %1331 = vmatpush1.bf16.msra.mxu0 0
      %1332 = vmatprep.subr.bf16.mxu0 0
      %1333 = vmatpush1.bf16.msra.mxu0 0
      %1334 = vmatprep.subr.bf16.mxu0 0
      %1335 = vmatpush1.bf16.msra.mxu0 0
      %1336 = vmatprep.subr.bf16.mxu0 0
      %1337 = vmatpush1.bf16.msra.mxu0 0
      %1338 = vmatprep.subr.bf16.mxu0 0
      %1339 = vmatpush1.bf16.msra.mxu0 0
      %1340 = vmatprep.subr.bf16.mxu0 0
      %1341 = vmatpush1.bf16.msra.mxu0 0
      %1342 = vmatprep.subr.bf16.mxu0 0
      %1343 = vmatpush1.bf16.msra.mxu0 0
      %1344 = vmatprep.subr.bf16.mxu0 0
      %1345 = vmatpush1.bf16.msra.mxu0 0
      %1346 = vmatprep.subr.bf16.mxu0 0
      %1347 = vmatpush1.bf16.msra.mxu0 0
      %1348 = vmatprep.subr.bf16.mxu0 0
      %1349 = vmatpush1.bf16.msra.mxu0 0
      %1350 = vmatprep.subr.bf16.mxu0 0
      %1351 = vmatpush1.bf16.msra.mxu0 0
      %1352 = vmatprep.subr.bf16.mxu0 0
      %1353 = vmatpush1.bf16.msra.mxu0 0
      %1354 = vmatprep.mubr.bf16.mxu0 0
      %1355 = vmatmul.mubr.bf16.gmra.mrb[0].mxu0 %v1317
      %v1356 = vpop.f32.mrb[0].mxu0
      %v1357 = vadd.f32 0.0, %v1356
      %v1358 = vpop.f32.mrb[0].mxu0
      %v1359 = vpop.f32.mrb[0].mxu0
      %v1360 = vpop.f32.mrb[0].mxu0
      %1361 = vdwg.mxu0
      %v1362 = vrcp.pop %v1311
      %v1363 = vmul.f32 %v1357, %v1362
      %v1364 = vpack.c.bf16 %v1363, %v1363
      %v1369 = vunpack.c.l.b16 %v1127
      %v1370 = vunpack.c.l.b16 %v1128
      %v1371 = vunpack.c.l.b16 %v1129
      %v1372 = vunpack.c.l.b16 %v1130
      %v1373 = vpack.c.b16 %v1370, %v1369
      %v1374 = vpack.c.b16 %v1372, %v1371
      %v1378 = vsel %vm1069, %v1364, 0
      %1380 = vmatprep.subr.bf16.mxu0 0
      %1381 = vmatpush1.bf16.msra.mxu0 %v1373
      %1382 = vmatprep.subr.bf16.mxu0 0
      %1383 = vmatpush1.bf16.msra.mxu0 %v1374
      %1384 = vmatprep.subr.bf16.mxu0 0
      %1385 = vmatpush1.bf16.msra.mxu0 0
      %1386 = vmatprep.subr.bf16.mxu0 0
      %1387 = vmatpush1.bf16.msra.mxu0 0
      %1388 = vmatprep.subr.bf16.mxu0 0
      %1389 = vmatpush1.bf16.msra.mxu0 0
      %1390 = vmatprep.subr.bf16.mxu0 0
      %1391 = vmatpush1.bf16.msra.mxu0 0
      %1392 = vmatprep.subr.bf16.mxu0 0
      %1393 = vmatpush1.bf16.msra.mxu0 0
      %1394 = vmatprep.subr.bf16.mxu0 0
      %1395 = vmatpush1.bf16.msra.mxu0 0
      %1396 = vmatprep.subr.bf16.mxu0 0
      %1397 = vmatpush1.bf16.msra.mxu0 0
      %1398 = vmatprep.subr.bf16.mxu0 0
      %1399 = vmatpush1.bf16.msra.mxu0 0
      %1400 = vmatprep.subr.bf16.mxu0 0
      %1401 = vmatpush1.bf16.msra.mxu0 0
      %1402 = vmatprep.subr.bf16.mxu0 0
      %1403 = vmatpush1.bf16.msra.mxu0 0
      %1404 = vmatprep.subr.bf16.mxu0 0
      %1405 = vmatpush1.bf16.msra.mxu0 0
      %1406 = vmatprep.subr.bf16.mxu0 0
      %1407 = vmatpush1.bf16.msra.mxu0 0
      %1408 = vmatprep.subr.bf16.mxu0 0
      %1409 = vmatpush1.bf16.msra.mxu0 0
      %1410 = vmatprep.subr.bf16.mxu0 0
      %1411 = vmatpush1.bf16.msra.mxu0 0
      %1412 = vmatprep.mubr.bf16.mxu0 0
      %1413 = vmatmul.mubr.bf16.gmra.mrb[0].mxu0 %v1378
      %v1414 = vpop.f32.mrb[0].mxu0
      %v1415 = vadd.f32 0.0, %v1414
      %v1416 = vpop.f32.mrb[0].mxu0
      %v1417 = vpop.f32.mrb[0].mxu0
      %v1418 = vpop.f32.mrb[0].mxu0
      %1419 = vdwg.mxu0
      %v1424 = vunpack.c.l.b16 %v1123
      %v1425 = vunpack.c.l.b16 %v1124
      %v1426 = vunpack.c.l.b16 %v1125
      %v1427 = vunpack.c.l.b16 %v1126
      %v1428 = vpack.c.b16 %v1425, %v1424
      %v1429 = vpack.c.b16 %v1427, %v1426
      %v1433 = vsel %vm1069, %v1249, 0
      %1435 = vmatprep.subr.bf16.mxu0 0
      %1436 = vmatpush1.bf16.msra.mxu0 %v1428
      %1437 = vmatprep.subr.bf16.mxu0 0
      %1438 = vmatpush1.bf16.msra.mxu0 %v1429
      %1439 = vmatprep.subr.bf16.mxu0 0
      %1440 = vmatpush1.bf16.msra.mxu0 0
      %1441 = vmatprep.subr.bf16.mxu0 0
      %1442 = vmatpush1.bf16.msra.mxu0 0
      %1443 = vmatprep.subr.bf16.mxu0 0
      %1444 = vmatpush1.bf16.msra.mxu0 0
      %1445 = vmatprep.subr.bf16.mxu0 0
      %1446 = vmatpush1.bf16.msra.mxu0 0
      %1447 = vmatprep.subr.bf16.mxu0 0
      %1448 = vmatpush1.bf16.msra.mxu0 0
      %1449 = vmatprep.subr.bf16.mxu0 0
      %1450 = vmatpush1.bf16.msra.mxu0 0
      %1451 = vmatprep.subr.bf16.mxu0 0
      %1452 = vmatpush1.bf16.msra.mxu0 0
      %1453 = vmatprep.subr.bf16.mxu0 0
      %1454 = vmatpush1.bf16.msra.mxu0 0
      %1455 = vmatprep.subr.bf16.mxu0 0
      %1456 = vmatpush1.bf16.msra.mxu0 0
      %1457 = vmatprep.subr.bf16.mxu0 0
      %1458 = vmatpush1.bf16.msra.mxu0 0
      %1459 = vmatprep.subr.bf16.mxu0 0
      %1460 = vmatpush1.bf16.msra.mxu0 0
      %1461 = vmatprep.subr.bf16.mxu0 0
      %1462 = vmatpush1.bf16.msra.mxu0 0
      %1463 = vmatprep.subr.bf16.mxu0 0
      %1464 = vmatpush1.bf16.msra.mxu0 0
      %1465 = vmatprep.subr.bf16.mxu0 0
      %1466 = vmatpush1.bf16.msra.mxu0 0
      %1467 = vmatprep.mubr.bf16.mxu0 0
      %1468 = vmatmul.mubr.bf16.gmra.mrb[0].mxu0 %v1433
      %v1469 = vpop.f32.mrb[0].mxu0
      %v1470 = vadd.f32 %v1415, %v1469
      %v1471 = vpop.f32.mrb[0].mxu0
      %v1472 = vpop.f32.mrb[0].mxu0
      %v1473 = vpop.f32.mrb[0].mxu0
      %1474 = vdwg.mxu0
      %1475 = vrot.lane.b32.xlu0 %v1139, 64
      %v1476 = vpop.permute.xlu0 %1475
      %1477 = vrot.lane.b32.xlu0 %v1140, 64
      %v1478 = vpop.permute.xlu0 %1477
      %v1480 = vsel %vm1069, %v1476, 0
      %v1483 = vsel %vm1069, %v1478, 0
      %1485 = vmatprep.subr.bf16.mxu0 0
      %1486 = vmatpush1.bf16.xpose.msra.mxu0 %v1483
      %1487 = vmatprep.subr.bf16.mxu0 0
      %1488 = vmatpush1.bf16.xpose.msra.mxu0 0
      %1489 = vmatprep.subr.bf16.mxu0 0
      %1490 = vmatpush1.bf16.xpose.msra.mxu0 0
      %1491 = vmatprep.subr.bf16.mxu0 0
      %1492 = vmatpush1.bf16.xpose.msra.mxu0 0
      %1493 = vmatprep.subr.bf16.mxu0 0
      %1494 = vmatpush1.bf16.xpose.msra.mxu0 0
      %1495 = vmatprep.subr.bf16.mxu0 0
      %1496 = vmatpush1.bf16.xpose.msra.mxu0 0
      %1497 = vmatprep.subr.bf16.mxu0 0
      %1498 = vmatpush1.bf16.xpose.msra.mxu0 0
      %1499 = vmatprep.subr.bf16.mxu0 0
      %1500 = vmatpush1.bf16.xpose.msra.mxu0 0
      %1501 = vmatprep.subr.bf16.mxu0 0
      %1502 = vmatpush1.bf16.xpose.msra.mxu0 0
      %1503 = vmatprep.subr.bf16.mxu0 0
      %1504 = vmatpush1.bf16.xpose.msra.mxu0 0
      %1505 = vmatprep.subr.bf16.mxu0 0
      %1506 = vmatpush1.bf16.xpose.msra.mxu0 0
      %1507 = vmatprep.subr.bf16.mxu0 0
      %1508 = vmatpush1.bf16.xpose.msra.mxu0 0
      %1509 = vmatprep.subr.bf16.mxu0 0
      %1510 = vmatpush1.bf16.xpose.msra.mxu0 0
      %1511 = vmatprep.subr.bf16.mxu0 0
      %1512 = vmatpush1.bf16.xpose.msra.mxu0 0
      %1513 = vmatprep.subr.bf16.mxu0 0
      %1514 = vmatpush1.bf16.xpose.msra.mxu0 0
      %1515 = vmatprep.subr.bf16.mxu0 0
      %1516 = vmatpush1.bf16.xpose.msra.mxu0 0
      %1517 = vmatprep.mubr.bf16.mxu0 0
      %1518 = vmatmul.mubr.bf16.gmra.mrb[0].mxu0 %v1480
      %v1519 = vpop.f32.mrb[0].mxu0
      %v1520 = vadd.f32 0.0, %v1519
      %v1521 = vpop.f32.mrb[0].mxu0
      %v1522 = vpop.f32.mrb[0].mxu0
      %v1523 = vpop.f32.mrb[0].mxu0
      %1524 = vdwg.mxu0
      %v1525 = vsel %vm1122, %v1520, -1e+30
      %v1526 = vsel %vm1189, %v1525, -inf
      %1527 = vmax.xlane.f32.xlu0 %v1526
      %v1528 = vpop.xlane.xlu0 %1527
      %v1529 = vsub.f32 %v1525, %v1528
      %v1530 = vmul.f32 %v1529, 1.442695
      %v1531 = vpow.pop %v1530
      %v1532 = vsel %vm1189, %v1531, 0.0
      %1533 = vadd.xlane.f32.xlu0 %v1532
      %v1534 = vpop.xlane.xlu0 %1533
      %v1535 = vpack.c.bf16 %v1531, %v1531
      %1536 = vrot.lane.b32.xlu0 %v1141, 64
      %v1537 = vpop.permute.xlu0 %1536
      %v1539 = vsel %vm1189, %v1535, 0
      %v1542 = vsel %vm1203, %v1537, 0
      %1544 = vmatprep.subr.bf16.mxu0 0
      %1545 = vmatpush1.bf16.msra.mxu0 %v1542
      %1546 = vmatprep.subr.bf16.mxu0 0
      %1547 = vmatpush1.bf16.msra.mxu0 0
      %1548 = vmatprep.subr.bf16.mxu0 0
      %1549 = vmatpush1.bf16.msra.mxu0 0
      %1550 = vmatprep.subr.bf16.mxu0 0
      %1551 = vmatpush1.bf16.msra.mxu0 0
      %1552 = vmatprep.subr.bf16.mxu0 0
      %1553 = vmatpush1.bf16.msra.mxu0 0
      %1554 = vmatprep.subr.bf16.mxu0 0
      %1555 = vmatpush1.bf16.msra.mxu0 0
      %1556 = vmatprep.subr.bf16.mxu0 0
      %1557 = vmatpush1.bf16.msra.mxu0 0
      %1558 = vmatprep.subr.bf16.mxu0 0
      %1559 = vmatpush1.bf16.msra.mxu0 0
      %1560 = vmatprep.subr.bf16.mxu0 0
      %1561 = vmatpush1.bf16.msra.mxu0 0
      %1562 = vmatprep.subr.bf16.mxu0 0
      %1563 = vmatpush1.bf16.msra.mxu0 0
      %1564 = vmatprep.subr.bf16.mxu0 0
      %1565 = vmatpush1.bf16.msra.mxu0 0
      %1566 = vmatprep.subr.bf16.mxu0 0
      %1567 = vmatpush1.bf16.msra.mxu0 0
      %1568 = vmatprep.subr.bf16.mxu0 0
      %1569 = vmatpush1.bf16.msra.mxu0 0
      %1570 = vmatprep.subr.bf16.mxu0 0
      %1571 = vmatpush1.bf16.msra.mxu0 0
      %1572 = vmatprep.subr.bf16.mxu0 0
      %1573 = vmatpush1.bf16.msra.mxu0 0
      %1574 = vmatprep.subr.bf16.mxu0 0
      %1575 = vmatpush1.bf16.msra.mxu0 0
      %1576 = vmatprep.mubr.bf16.mxu0 0
      %1577 = vmatmul.mubr.bf16.gmra.mrb[0].mxu0 %v1539
      %v1578 = vpop.f32.mrb[0].mxu0
      %v1579 = vadd.f32 0.0, %v1578
      %v1580 = vpop.f32.mrb[0].mxu0
      %v1581 = vpop.f32.mrb[0].mxu0
      %v1582 = vpop.f32.mrb[0].mxu0
      %1583 = vdwg.mxu0
      %v1584 = vrcp.pop %v1534
      %v1585 = vmul.f32 %v1579, %v1584
      %v1586 = vpack.c.bf16 %v1585, %v1585
      %v1591 = vunpack.c.l.b16 %v1131
      %v1592 = vunpack.c.l.b16 %v1132
      %v1593 = vunpack.c.l.b16 %v1133
      %v1594 = vunpack.c.l.b16 %v1134
      %v1595 = vpack.c.b16 %v1592, %v1591
      %v1596 = vpack.c.b16 %v1594, %v1593
      %v1600 = vsel %vm1069, %v1586, 0
      %1602 = vmatprep.subr.bf16.mxu0 0
      %1603 = vmatpush1.bf16.msra.mxu0 %v1595
      %1604 = vmatprep.subr.bf16.mxu0 0
      %1605 = vmatpush1.bf16.msra.mxu0 %v1596
      %1606 = vmatprep.subr.bf16.mxu0 0
      %1607 = vmatpush1.bf16.msra.mxu0 0
      %1608 = vmatprep.subr.bf16.mxu0 0
      %1609 = vmatpush1.bf16.msra.mxu0 0
      %1610 = vmatprep.subr.bf16.mxu0 0
      %1611 = vmatpush1.bf16.msra.mxu0 0
      %1612 = vmatprep.subr.bf16.mxu0 0
      %1613 = vmatpush1.bf16.msra.mxu0 0
      %1614 = vmatprep.subr.bf16.mxu0 0
      %1615 = vmatpush1.bf16.msra.mxu0 0
      %1616 = vmatprep.subr.bf16.mxu0 0
      %1617 = vmatpush1.bf16.msra.mxu0 0
      %1618 = vmatprep.subr.bf16.mxu0 0
      %1619 = vmatpush1.bf16.msra.mxu0 0
      %1620 = vmatprep.subr.bf16.mxu0 0
      %1621 = vmatpush1.bf16.msra.mxu0 0
      %1622 = vmatprep.subr.bf16.mxu0 0
      %1623 = vmatpush1.bf16.msra.mxu0 0
      %1624 = vmatprep.subr.bf16.mxu0 0
      %1625 = vmatpush1.bf16.msra.mxu0 0
      %1626 = vmatprep.subr.bf16.mxu0 0
      %1627 = vmatpush1.bf16.msra.mxu0 0
      %1628 = vmatprep.subr.bf16.mxu0 0
      %1629 = vmatpush1.bf16.msra.mxu0 0
      %1630 = vmatprep.subr.bf16.mxu0 0
      %1631 = vmatpush1.bf16.msra.mxu0 0
      %1632 = vmatprep.subr.bf16.mxu0 0
      %1633 = vmatpush1.bf16.msra.mxu0 0
      %1634 = vmatprep.mubr.bf16.mxu0 0
      %1635 = vmatmul.mubr.bf16.gmra.mrb[0].mxu0 %v1600
      %v1636 = vpop.f32.mrb[0].mxu0
      %v1637 = vadd.f32 0.0, %v1636
      %v1638 = vpop.f32.mrb[0].mxu0
      %v1639 = vpop.f32.mrb[0].mxu0
      %v1640 = vpop.f32.mrb[0].mxu0
      %1641 = vdwg.mxu0
      %v1642 = vadd.f32 %v1470, %v1637
      %1643 = vrot.lane.b32.xlu0 %v1139, 32
      %v1644 = vpop.permute.xlu0 %1643
      %1645 = vrot.lane.b32.xlu0 %v1140, 32
      %v1646 = vpop.permute.xlu0 %1645
      %v1648 = vsel %vm1069, %v1644, 0
      %v1651 = vsel %vm1069, %v1646, 0
      %1653 = vmatprep.subr.bf16.mxu0 0
      %1654 = vmatpush1.bf16.xpose.msra.mxu0 %v1651
      %1655 = vmatprep.subr.bf16.mxu0 0
      %1656 = vmatpush1.bf16.xpose.msra.mxu0 0
      %1657 = vmatprep.subr.bf16.mxu0 0
      %1658 = vmatpush1.bf16.xpose.msra.mxu0 0
      %1659 = vmatprep.subr.bf16.mxu0 0
      %1660 = vmatpush1.bf16.xpose.msra.mxu0 0
      %1661 = vmatprep.subr.bf16.mxu0 0
      %1662 = vmatpush1.bf16.xpose.msra.mxu0 0
      %1663 = vmatprep.subr.bf16.mxu0 0
      %1664 = vmatpush1.bf16.xpose.msra.mxu0 0
      %1665 = vmatprep.subr.bf16.mxu0 0
      %1666 = vmatpush1.bf16.xpose.msra.mxu0 0
      %1667 = vmatprep.subr.bf16.mxu0 0
      %1668 = vmatpush1.bf16.xpose.msra.mxu0 0
      %1669 = vmatprep.subr.bf16.mxu0 0
      %1670 = vmatpush1.bf16.xpose.msra.mxu0 0
      %1671 = vmatprep.subr.bf16.mxu0 0
      %1672 = vmatpush1.bf16.xpose.msra.mxu0 0
      %1673 = vmatprep.subr.bf16.mxu0 0
      %1674 = vmatpush1.bf16.xpose.msra.mxu0 0
      %1675 = vmatprep.subr.bf16.mxu0 0
      %1676 = vmatpush1.bf16.xpose.msra.mxu0 0
      %1677 = vmatprep.subr.bf16.mxu0 0
      %1678 = vmatpush1.bf16.xpose.msra.mxu0 0
      %1679 = vmatprep.subr.bf16.mxu0 0
      %1680 = vmatpush1.bf16.xpose.msra.mxu0 0
      %1681 = vmatprep.subr.bf16.mxu0 0
      %1682 = vmatpush1.bf16.xpose.msra.mxu0 0
      %1683 = vmatprep.subr.bf16.mxu0 0
      %1684 = vmatpush1.bf16.xpose.msra.mxu0 0
      %1685 = vmatprep.mubr.bf16.mxu0 0
      %1686 = vmatmul.mubr.bf16.gmra.mrb[0].mxu0 %v1648
      %v1687 = vpop.f32.mrb[0].mxu0
      %v1688 = vadd.f32 0.0, %v1687
      %v1689 = vpop.f32.mrb[0].mxu0
      %v1690 = vpop.f32.mrb[0].mxu0
      %v1691 = vpop.f32.mrb[0].mxu0
      %1692 = vdwg.mxu0
      %v1693 = vsel %vm1122, %v1688, -1e+30
      %v1694 = vsel %vm1189, %v1693, -inf
      %1695 = vmax.xlane.f32.xlu0 %v1694
      %v1696 = vpop.xlane.xlu0 %1695
      %v1697 = vsub.f32 %v1693, %v1696
      %v1698 = vmul.f32 %v1697, 1.442695
      %v1699 = vpow.pop %v1698
      %v1700 = vsel %vm1189, %v1699, 0.0
      %1701 = vadd.xlane.f32.xlu0 %v1700
      %v1702 = vpop.xlane.xlu0 %1701
      %v1703 = vpack.c.bf16 %v1699, %v1699
      %1704 = vrot.lane.b32.xlu0 %v1141, 32
      %v1705 = vpop.permute.xlu0 %1704
      %v1707 = vsel %vm1189, %v1703, 0
      %v1710 = vsel %vm1203, %v1705, 0
      %1712 = vmatprep.subr.bf16.mxu0 0
      %1713 = vmatpush1.bf16.msra.mxu0 %v1710
      %1714 = vmatprep.subr.bf16.mxu0 0
      %1715 = vmatpush1.bf16.msra.mxu0 0
      %1716 = vmatprep.subr.bf16.mxu0 0
      %1717 = vmatpush1.bf16.msra.mxu0 0
      %1718 = vmatprep.subr.bf16.mxu0 0
      %1719 = vmatpush1.bf16.msra.mxu0 0
      %1720 = vmatprep.subr.bf16.mxu0 0
      %1721 = vmatpush1.bf16.msra.mxu0 0
      %1722 = vmatprep.subr.bf16.mxu0 0
      %1723 = vmatpush1.bf16.msra.mxu0 0
      %1724 = vmatprep.subr.bf16.mxu0 0
      %1725 = vmatpush1.bf16.msra.mxu0 0
      %1726 = vmatprep.subr.bf16.mxu0 0
      %1727 = vmatpush1.bf16.msra.mxu0 0
      %1728 = vmatprep.subr.bf16.mxu0 0
      %1729 = vmatpush1.bf16.msra.mxu0 0
      %1730 = vmatprep.subr.bf16.mxu0 0
      %1731 = vmatpush1.bf16.msra.mxu0 0
      %1732 = vmatprep.subr.bf16.mxu0 0
      %1733 = vmatpush1.bf16.msra.mxu0 0
      %1734 = vmatprep.subr.bf16.mxu0 0
      %1735 = vmatpush1.bf16.msra.mxu0 0
      %1736 = vmatprep.subr.bf16.mxu0 0
      %1737 = vmatpush1.bf16.msra.mxu0 0
      %1738 = vmatprep.subr.bf16.mxu0 0
      %1739 = vmatpush1.bf16.msra.mxu0 0
      %1740 = vmatprep.subr.bf16.mxu0 0
      %1741 = vmatpush1.bf16.msra.mxu0 0
      %1742 = vmatprep.subr.bf16.mxu0 0
      %1743 = vmatpush1.bf16.msra.mxu0 0
      %1744 = vmatprep.mubr.bf16.mxu0 0
      %1745 = vmatmul.mubr.bf16.gmra.mrb[0].mxu0 %v1707
      %v1746 = vpop.f32.mrb[0].mxu0
      %v1747 = vadd.f32 0.0, %v1746
      %v1748 = vpop.f32.mrb[0].mxu0
      %v1749 = vpop.f32.mrb[0].mxu0
      %v1750 = vpop.f32.mrb[0].mxu0
      %1751 = vdwg.mxu0
      %v1752 = vrcp.pop %v1702
      %v1753 = vmul.f32 %v1747, %v1752
      %v1754 = vpack.c.bf16 %v1753, %v1753
      %v1759 = vunpack.c.l.b16 %v1135
      %v1760 = vunpack.c.l.b16 %v1136
      %v1761 = vunpack.c.l.b16 %v1137
      %v1762 = vunpack.c.l.b16 %v1138
      %v1763 = vpack.c.b16 %v1760, %v1759
      %v1764 = vpack.c.b16 %v1762, %v1761
      %v1768 = vsel %vm1069, %v1754, 0
      %1770 = vmatprep.subr.bf16.mxu0 0
      %1771 = vmatpush1.bf16.msra.mxu0 %v1763
      %1772 = vmatprep.subr.bf16.mxu0 0
      %1773 = vmatpush1.bf16.msra.mxu0 %v1764
      %1774 = vmatprep.subr.bf16.mxu0 0
      %1775 = vmatpush1.bf16.msra.mxu0 0
      %1776 = vmatprep.subr.bf16.mxu0 0
      %1777 = vmatpush1.bf16.msra.mxu0 0
      %1778 = vmatprep.subr.bf16.mxu0 0
      %1779 = vmatpush1.bf16.msra.mxu0 0
      %1780 = vmatprep.subr.bf16.mxu0 0
      %1781 = vmatpush1.bf16.msra.mxu0 0
      %1782 = vmatprep.subr.bf16.mxu0 0
      %1783 = vmatpush1.bf16.msra.mxu0 0
      %1784 = vmatprep.subr.bf16.mxu0 0
      %1785 = vmatpush1.bf16.msra.mxu0 0
      %1786 = vmatprep.subr.bf16.mxu0 0
      %1787 = vmatpush1.bf16.msra.mxu0 0
      %1788 = vmatprep.subr.bf16.mxu0 0
      %1789 = vmatpush1.bf16.msra.mxu0 0
      %1790 = vmatprep.subr.bf16.mxu0 0
      %1791 = vmatpush1.bf16.msra.mxu0 0
      %1792 = vmatprep.subr.bf16.mxu0 0
      %1793 = vmatpush1.bf16.msra.mxu0 0
      %1794 = vmatprep.subr.bf16.mxu0 0
      %1795 = vmatpush1.bf16.msra.mxu0 0
      %1796 = vmatprep.subr.bf16.mxu0 0
      %1797 = vmatpush1.bf16.msra.mxu0 0
      %1798 = vmatprep.subr.bf16.mxu0 0
      %1799 = vmatpush1.bf16.msra.mxu0 0
      %1800 = vmatprep.subr.bf16.mxu0 0
      %1801 = vmatpush1.bf16.msra.mxu0 0
      %1802 = vmatprep.mubr.bf16.mxu0 0
      %1803 = vmatmul.mubr.bf16.gmra.mrb[0].mxu0 %v1768
      %v1804 = vpop.f32.mrb[0].mxu0
      %v1805 = vadd.f32 0.0, %v1804
      %v1806 = vpop.f32.mrb[0].mxu0
      %v1807 = vpop.f32.mrb[0].mxu0
      %v1808 = vpop.f32.mrb[0].mxu0
      %1809 = vdwg.mxu0
      %v1810 = vadd.f32 %v1642, %v1805
      %v1811 = vpack.c.bf16 %v1054, %v1054
      %v1812 = vpack.c.bf16 %v1055, %v1055
      %v1813 = vpack.c.bf16 %v1056, %v1056
      %v1814 = vpack.c.bf16 %v1057, %v1057
      %v1815 = vld [vmem:[%s440] sm:$0xf]
      %v1816 = vld [vmem:[%s440 + $0x4] sm:$0xf]
      %v1817 = vld [vmem:[%s440 + $0x8] sm:$0xf]
      %v1818 = vld [vmem:[%s440 + $0xc] sm:$0xf]
      %v1819 = vld [vmem:[%s440 + $0x10] sm:$0xf]
      %v1820 = vld [vmem:[%s440 + $0x14] sm:$0xf]
      %v1821 = vld [vmem:[%s440 + $0x18] sm:$0xf]
      %v1822 = vld [vmem:[%s440 + $0x1c] sm:$0xf]
      %v1823 = vld [vmem:[%s440 + $0x20] sm:$0xf]
      %v1824 = vld [vmem:[%s440 + $0x24] sm:$0xf]
      %v1825 = vld [vmem:[%s440 + $0x28] sm:$0xf]
      %v1826 = vld [vmem:[%s440 + $0x2c] sm:$0xf]
      %v1827 = vld [vmem:[%s440 + $0x30] sm:$0xf]
      %v1828 = vld [vmem:[%s440 + $0x34] sm:$0xf]
      %v1829 = vld [vmem:[%s440 + $0x38] sm:$0xf]
      %v1830 = vld [vmem:[%s440 + $0x3c] sm:$0xf]
      %v1831 = vld [vmem:[%s440 + $0x40] sm:$0xf]
      %v1832 = vld [vmem:[%s440 + $0x44] sm:$0xf]
      %v1833 = vld [vmem:[%s440 + $0x48] sm:$0xf]
      %v1834 = vld [vmem:[%s440 + $0x4c] sm:$0xf]
      %v1835 = vld [vmem:[%s440 + $0x50] sm:$0xf]
      %v1836 = vld [vmem:[%s440 + $0x54] sm:$0xf]
      %v1837 = vld [vmem:[%s440 + $0x58] sm:$0xf]
      %v1838 = vld [vmem:[%s440 + $0x5c] sm:$0xf]
      %v1839 = vld [vmem:[%s440 + $0x60] sm:$0xf]
      %v1840 = vld [vmem:[%s440 + $0x64] sm:$0xf]
      %v1841 = vld [vmem:[%s440 + $0x68] sm:$0xf]
      %v1842 = vld [vmem:[%s440 + $0x6c] sm:$0xf]
      %v1843 = vld [vmem:[%s440 + $0x70] sm:$0xf]
      %v1844 = vld [vmem:[%s440 + $0x74] sm:$0xf]
      %v1845 = vld [vmem:[%s440 + $0x78] sm:$0xf]
      %v1846 = vld [vmem:[%s440 + $0x7c] sm:$0xf]
      %v1847 = vld [vmem:[%s440 + $0x80] sm:$0xf]
      %v1848 = vld [vmem:[%s440 + $0x84] sm:$0xf]
      %v1849 = vld [vmem:[%s440 + $0x88] sm:$0xf]
      %v1850 = vld [vmem:[%s440 + $0x8c] sm:$0xf]
      %v1851 = vld [vmem:[%s440 + $0x90] sm:$0xf]
      %v1852 = vld [vmem:[%s440 + $0x94] sm:$0xf]
      %v1853 = vld [vmem:[%s440 + $0x98] sm:$0xf]
      %v1854 = vld [vmem:[%s440 + $0x9c] sm:$0xf]
      %v1855 = vld [vmem:[%s440 + $0xa0] sm:$0xf]
      %v1856 = vld [vmem:[%s440 + $0xa4] sm:$0xf]
      %v1857 = vld [vmem:[%s440 + $0xa8] sm:$0xf]
      %v1858 = vld [vmem:[%s440 + $0xac] sm:$0xf]
      %v1859 = vld [vmem:[%s440 + $0xb0] sm:$0xf]
      %v1860 = vld [vmem:[%s440 + $0xb4] sm:$0xf]
      %v1861 = vld [vmem:[%s440 + $0xb8] sm:$0xf]
      %v1862 = vld [vmem:[%s440 + $0xbc] sm:$0xf]
      %v1863 = vld [vmem:[%s440 + $0xc0] sm:$0xf]
      %v1864 = vld [vmem:[%s440 + $0xc4] sm:$0xf]
      %v1865 = vld [vmem:[%s440 + $0xc8] sm:$0xf]
      %v1866 = vld [vmem:[%s440 + $0xcc] sm:$0xf]
      %v1867 = vld [vmem:[%s440 + $0xd0] sm:$0xf]
      %v1868 = vld [vmem:[%s440 + $0xd4] sm:$0xf]
      %v1869 = vld [vmem:[%s440 + $0xd8] sm:$0xf]
      %v1870 = vld [vmem:[%s440 + $0xdc] sm:$0xf]
      %v1871 = vld [vmem:[%s440 + $0xe0] sm:$0xf]
      %v1872 = vld [vmem:[%s440 + $0xe4] sm:$0xf]
      %v1873 = vld [vmem:[%s440 + $0xe8] sm:$0xf]
      %v1874 = vld [vmem:[%s440 + $0xec] sm:$0xf]
      %v1875 = vld [vmem:[%s440 + $0xf0] sm:$0xf]
      %v1876 = vld [vmem:[%s440 + $0xf4] sm:$0xf]
      %v1877 = vld [vmem:[%s440 + $0xf8] sm:$0xf]
      %v1878 = vld [vmem:[%s440 + $0xfc] sm:$0xf]
      %v1879 = vld [vmem:[%s443] sm:$0x1]
      %v1881 = vlaneseq
      %v1882 = vshrl.u32 %v1881, 7
      %v1883 = vsub.s32 0, %v1882
      %v1884 = vrot.slane %v1879, %v1883
      %v1950 = vunpack.c.l.b16 %v1815
      %v1951 = vunpack.c.l.b16 %v1816
      %v1952 = vunpack.c.l.b16 %v1817
      %v1953 = vunpack.c.l.b16 %v1818
      %v1954 = vunpack.c.l.b16 %v1819
      %v1955 = vunpack.c.l.b16 %v1820
      %v1956 = vunpack.c.l.b16 %v1821
      %v1957 = vunpack.c.l.b16 %v1822
      %v1958 = vunpack.c.l.b16 %v1823
      %v1959 = vunpack.c.l.b16 %v1824
      %v1960 = vunpack.c.l.b16 %v1825
      %v1961 = vunpack.c.l.b16 %v1826
      %v1962 = vunpack.c.l.b16 %v1827
      %v1963 = vunpack.c.l.b16 %v1828
      %v1964 = vunpack.c.l.b16 %v1829
      %v1965 = vunpack.c.l.b16 %v1830
      %v1966 = vunpack.c.l.b16 %v1831
      %v1967 = vunpack.c.l.b16 %v1832
      %v1968 = vunpack.c.l.b16 %v1833
      %v1969 = vunpack.c.l.b16 %v1834
      %v1970 = vunpack.c.l.b16 %v1835
      %v1971 = vunpack.c.l.b16 %v1836
      %v1972 = vunpack.c.l.b16 %v1837
      %v1973 = vunpack.c.l.b16 %v1838
      %v1974 = vunpack.c.l.b16 %v1839
      %v1975 = vunpack.c.l.b16 %v1840
      %v1976 = vunpack.c.l.b16 %v1841
      %v1977 = vunpack.c.l.b16 %v1842
      %v1978 = vunpack.c.l.b16 %v1843
      %v1979 = vunpack.c.l.b16 %v1844
      %v1980 = vunpack.c.l.b16 %v1845
      %v1981 = vunpack.c.l.b16 %v1846
      %v1982 = vunpack.c.l.b16 %v1847
      %v1983 = vunpack.c.l.b16 %v1848
      %v1984 = vunpack.c.l.b16 %v1849
      %v1985 = vunpack.c.l.b16 %v1850
      %v1986 = vunpack.c.l.b16 %v1851
      %v1987 = vunpack.c.l.b16 %v1852
      %v1988 = vunpack.c.l.b16 %v1853
      %v1989 = vunpack.c.l.b16 %v1854
      %v1990 = vunpack.c.l.b16 %v1855
      %v1991 = vunpack.c.l.b16 %v1856
      %v1992 = vunpack.c.l.b16 %v1857
      %v1993 = vunpack.c.l.b16 %v1858
      %v1994 = vunpack.c.l.b16 %v1859
      %v1995 = vunpack.c.l.b16 %v1860
      %v1996 = vunpack.c.l.b16 %v1861
      %v1997 = vunpack.c.l.b16 %v1862
      %v1998 = vunpack.c.l.b16 %v1863
      %v1999 = vunpack.c.l.b16 %v1864
      %v2000 = vunpack.c.l.b16 %v1865
      %v2001 = vunpack.c.l.b16 %v1866
      %v2002 = vunpack.c.l.b16 %v1867
      %v2003 = vunpack.c.l.b16 %v1868
      %v2004 = vunpack.c.l.b16 %v1869
      %v2005 = vunpack.c.l.b16 %v1870
      %v2006 = vunpack.c.l.b16 %v1871
      %v2007 = vunpack.c.l.b16 %v1872
      %v2008 = vunpack.c.l.b16 %v1873
      %v2009 = vunpack.c.l.b16 %v1874
      %v2010 = vunpack.c.l.b16 %v1875
      %v2011 = vunpack.c.l.b16 %v1876
      %v2012 = vunpack.c.l.b16 %v1877
      %v2013 = vunpack.c.l.b16 %v1878
      %v2014 = vpack.c.b16 %v1951, %v1950
      %v2015 = vpack.c.b16 %v1953, %v1952
      %v2016 = vpack.c.b16 %v1955, %v1954
      %v2017 = vpack.c.b16 %v1957, %v1956
      %v2018 = vpack.c.b16 %v1959, %v1958
      %v2019 = vpack.c.b16 %v1961, %v1960
      %v2020 = vpack.c.b16 %v1963, %v1962
      %v2021 = vpack.c.b16 %v1965, %v1964
      %v2022 = vpack.c.b16 %v1967, %v1966
      %v2023 = vpack.c.b16 %v1969, %v1968
      %v2024 = vpack.c.b16 %v1971, %v1970
      %v2025 = vpack.c.b16 %v1973, %v1972
      %v2026 = vpack.c.b16 %v1975, %v1974
      %v2027 = vpack.c.b16 %v1977, %v1976
      %v2028 = vpack.c.b16 %v1979, %v1978
      %v2029 = vpack.c.b16 %v1981, %v1980
      %v2030 = vpack.c.b16 %v1983, %v1982
      %v2031 = vpack.c.b16 %v1985, %v1984
      %v2032 = vpack.c.b16 %v1987, %v1986
      %v2033 = vpack.c.b16 %v1989, %v1988
      %v2034 = vpack.c.b16 %v1991, %v1990
      %v2035 = vpack.c.b16 %v1993, %v1992
      %v2036 = vpack.c.b16 %v1995, %v1994
      %v2037 = vpack.c.b16 %v1997, %v1996
      %v2038 = vpack.c.b16 %v1999, %v1998
      %v2039 = vpack.c.b16 %v2001, %v2000
      %v2040 = vpack.c.b16 %v2003, %v2002
      %v2041 = vpack.c.b16 %v2005, %v2004
      %v2042 = vpack.c.b16 %v2007, %v2006
      %v2043 = vpack.c.b16 %v2009, %v2008
      %v2044 = vpack.c.b16 %v2011, %v2010
      %v2045 = vpack.c.b16 %v2013, %v2012
      %2078 = vmatprep.subr.bf16.mxu0 0
      %2079 = vmatpush1.bf16.msra.mxu0 %v2014
      %2080 = vmatprep.subr.bf16.mxu0 0
      %2081 = vmatpush1.bf16.msra.mxu0 %v2015
      %2082 = vmatprep.subr.bf16.mxu0 0
      %2083 = vmatpush1.bf16.msra.mxu0 %v2016
      %2084 = vmatprep.subr.bf16.mxu0 0
      %2085 = vmatpush1.bf16.msra.mxu0 %v2017
      %2086 = vmatprep.subr.bf16.mxu0 0
      %2087 = vmatpush1.bf16.msra.mxu0 %v2018
      %2088 = vmatprep.subr.bf16.mxu0 0
      %2089 = vmatpush1.bf16.msra.mxu0 %v2019
      %2090 = vmatprep.subr.bf16.mxu0 0
      %2091 = vmatpush1.bf16.msra.mxu0 %v2020
      %2092 = vmatprep.subr.bf16.mxu0 0
      %2093 = vmatpush1.bf16.msra.mxu0 %v2021
      %2094 = vmatprep.subr.bf16.mxu0 0
      %2095 = vmatpush1.bf16.msra.mxu0 %v2022
      %2096 = vmatprep.subr.bf16.mxu0 0
      %2097 = vmatpush1.bf16.msra.mxu0 %v2023
      %2098 = vmatprep.subr.bf16.mxu0 0
      %2099 = vmatpush1.bf16.msra.mxu0 %v2024
      %2100 = vmatprep.subr.bf16.mxu0 0
      %2101 = vmatpush1.bf16.msra.mxu0 %v2025
      %2102 = vmatprep.subr.bf16.mxu0 0
      %2103 = vmatpush1.bf16.msra.mxu0 %v2026
      %2104 = vmatprep.subr.bf16.mxu0 0
      %2105 = vmatpush1.bf16.msra.mxu0 %v2027
      %2106 = vmatprep.subr.bf16.mxu0 0
      %2107 = vmatpush1.bf16.msra.mxu0 %v2028
      %2108 = vmatprep.subr.bf16.mxu0 0
      %2109 = vmatpush1.bf16.msra.mxu0 %v2029
      %2110 = vmatprep.mubr.bf16.mxu0 %v1812
      %2111 = vmatmul.mubr.bf16.gmra.mrb[0].mxu0 %v1811
      %v2112 = vpop.f32.mrb[0].mxu0
      %v2113 = vadd.f32 %v1884, %v2112
      %v2114 = vpop.f32.mrb[0].mxu0
      %v2115 = vpop.f32.mrb[0].mxu0
      %v2116 = vpop.f32.mrb[0].mxu0
      %2117 = vdwg.mxu0
      %2118 = vmatprep.subr.bf16.mxu0 0
      %2119 = vmatpush1.bf16.msra.mxu0 %v2030
      %2120 = vmatprep.subr.bf16.mxu0 0
      %2121 = vmatpush1.bf16.msra.mxu0 %v2031
      %2122 = vmatprep.subr.bf16.mxu0 0
      %2123 = vmatpush1.bf16.msra.mxu0 %v2032
      %2124 = vmatprep.subr.bf16.mxu0 0
      %2125 = vmatpush1.bf16.msra.mxu0 %v2033
      %2126 = vmatprep.subr.bf16.mxu0 0
      %2127 = vmatpush1.bf16.msra.mxu0 %v2034
      %2128 = vmatprep.subr.bf16.mxu0 0
      %2129 = vmatpush1.bf16.msra.mxu0 %v2035
      %2130 = vmatprep.subr.bf16.mxu0 0
      %2131 = vmatpush1.bf16.msra.mxu0 %v2036
      %2132 = vmatprep.subr.bf16.mxu0 0
      %2133 = vmatpush1.bf16.msra.mxu0 %v2037
      %2134 = vmatprep.subr.bf16.mxu0 0
      %2135 = vmatpush1.bf16.msra.mxu0 %v2038
      %2136 = vmatprep.subr.bf16.mxu0 0
      %2137 = vmatpush1.bf16.msra.mxu0 %v2039
      %2138 = vmatprep.subr.bf16.mxu0 0
      %2139 = vmatpush1.bf16.msra.mxu0 %v2040
      %2140 = vmatprep.subr.bf16.mxu0 0
      %2141 = vmatpush1.bf16.msra.mxu0 %v2041
      %2142 = vmatprep.subr.bf16.mxu0 0
      %2143 = vmatpush1.bf16.msra.mxu0 %v2042
      %2144 = vmatprep.subr.bf16.mxu0 0
      %2145 = vmatpush1.bf16.msra.mxu0 %v2043
      %2146 = vmatprep.subr.bf16.mxu0 0
      %2147 = vmatpush1.bf16.msra.mxu0 %v2044
      %2148 = vmatprep.subr.bf16.mxu0 0
      %2149 = vmatpush1.bf16.msra.mxu0 %v2045
      %2150 = vmatprep.mubr.bf16.mxu0 %v1814
      %2151 = vmatmul.mubr.bf16.gmra.mrb[0].mxu0 %v1813
      %v2152 = vpop.f32.mrb[0].mxu0
      %v2153 = vadd.f32 %v2113, %v2152
      %v2154 = vpop.f32.mrb[0].mxu0
      %v2155 = vpop.f32.mrb[0].mxu0
      %v2156 = vpop.f32.mrb[0].mxu0
      %2157 = vdwg.mxu0
      %v2158 = vadd.f32 %v1810, %v2153
      %v2159 = vadd.f32 %v2158, %v451
      %2160 = vst [vmem:[%s10] sm:$0xff] %v2159
      // Predicated region
      $region65: #{_lambda_.2} parent=59 // pred_check
        %p2161 = pneg %p279
      $region66: #{_lambda_.2} parent=59 // pred_check_branch
        %2163 = sbr.rel (%p2161) target = $region68
      $region67: #{_lambda_.2} parent=59 // pred_region
        _
      $region68: #{_lambda_.2} parent=59 // pred_fallthru
        _
      // Predicated region
      $region69: #{_lambda_.2} parent=59 // pred_check
        %p2164 = pneg %p279
      $region70: #{_lambda_.2} parent=59 // pred_check_branch
        %2166 = sbr.rel (%p2164) target = $region72
      $region71: #{_lambda_.2} parent=59 // pred_region
        _
      $region72: #{_lambda_.2} parent=59 // pred_fallthru
        _
    $region60: #{_lambda_.2} parent=5 // pred_fallthru
      _
    %p2167 = scmp.le.s32.totalorder 2, %s16
    // Predicated region
    $region73: #{_lambda_.2} parent=5 // pred_check
      %p2168 = pneg %p2167
    $region74: #{_lambda_.2} parent=5 // pred_check_branch
      %2170 = sbr.rel (%p2168) target = $region76
    $region75: #{_lambda_.2} parent=5 // pred_region
      %s2171 = ssub.s32 %s16, 2
    $region76: #{_lambda_.2} parent=5 // pred_fallthru
      _
  $region6: #{_lambda_.2} parent=0 // loop_footer
    %s20 = sadd.s32 1, %s16
  $region7: #{_lambda_.2} parent=0 // loop_footer_branch
    %15 = sbr.rel target = $region3
  $region8: #{_lambda_.2} parent=0 // loop_exit
    _

</llo_original>
